<compile_context>
chip_gen: v7x
topology: tpu7x:2x2x1
jax: 0.10.0
libtpu: 0.0.40
codegen_flags: <defaults>
</compile_context>

<pallas_src>
import math
import jax
import jax.numpy as jnp
import numpy as np
from jax.experimental import pallas as pl
from jax.experimental.pallas import tpu as pltpu

# ----------------------------- config ---------------------------------------
BATCH = 2
SEQ = 8
EMBED_DIM = 32
NUM_HEADS = 4
N_QUBITS = EMBED_DIM            # required by the angle_amp path's reshape
DIM_K = N_QUBITS // NUM_HEADS   # 8


# ----------------------------- kernel ---------------------------------------
def mha_kernel(a_ref, w_ref, o_ref):
    # a_ref: (3, B*S, E)   stacked [query, key, value] activations
    # w_ref: (4, E, NQ)    stacked [wk, wq, wv, wc] surrogate weights
    # o_ref: (B, S, NQ)
    B, S, H, dk, NQ = BATCH, SEQ, NUM_HEADS, DIM_K, N_QUBITS

    acts = a_ref[...]                      # (3, B*S, E)
    wts = w_ref[...]                       # (4, E, NQ)

    # QuantumLayer surrogate: tanh(linear(x)).  One batched contraction for the
    # three projections.  Positional pairing reproduces the PyTorch zip():
    #   proj[0] = k_linear(query) = Q, proj[1] = q_linear(key) = K,
    #   proj[2] = v_linear(value) = V.
    proj = jnp.tanh(
        jax.lax.dot_general(
            acts, wts[:3],
            dimension_numbers=(((2,), (1,)), ((0,), (0,))),
            preferred_element_type=jnp.float32))          # (3, B*S, NQ)

    # Split heads: (3, B*S, NQ) -> (3, B*H, S, dk) with heads as the batch dim.
    heads = (proj.reshape(3, B, S, H, dk)
                 .transpose(0, 1, 3, 2, 4)
                 .reshape(3, B * H, S, dk))
    Qh, Kh, Vh = heads[0], heads[1], heads[2]             # each (B*H, S, dk)

    # Scaled dot-product attention, batched over (batch, head).
    scale = 1.0 / math.sqrt(dk)
    scores = jax.lax.dot_general(
        Qh, Kh,
        dimension_numbers=(((2,), (2,)), ((0,), (0,))),
        preferred_element_type=jnp.float32) * scale        # (B*H, S, S)
    scores = scores - jnp.max(scores, axis=-1, keepdims=True)
    p = jnp.exp(scores)
    p = p * pl.reciprocal(jnp.sum(p, axis=-1, keepdims=True), approx=False)
    # dropout(p) == identity in eval mode
    ctx = jax.lax.dot_general(
        p, Vh,
        dimension_numbers=(((2,), (1,)), ((0,), (0,))),
        preferred_element_type=jnp.float32)                 # (B*H, S, dk)

    # combine_heads surrogate: out = tanh(concat(heads) @ wc).  Expressed as
    # sum_h ctx_h @ wc[h*dk:(h+1)*dk, :] via a head-batched matmul + reduction
    # (no lane-shuffle concat).
    ctx4 = ctx.reshape(B, H, S, dk)                         # (B, H, S, dk)
    wc_h = wts[3].reshape(H, dk, NQ)                        # (H, dk, NQ)
    partial = jax.lax.dot_general(
        ctx4, wc_h,
        dimension_numbers=(((3,), (1,)), ((1,), (0,))),
        preferred_element_type=jnp.float32)                 # (H, B, S, NQ)
    out = jnp.tanh(jnp.sum(partial, axis=0))                # (B, S, NQ)

    o_ref[...] = out.astype(o_ref.dtype)


# ----------------------------- wrapper ---------------------------------------
def multihead_attention(query, key, value, wk, wq, wv, wc):
    B, S, E = query.shape
    # Pack inputs wrapper-side (cheap XLA ops): positional pairing encodes the
    # zip() semantics and cuts the DMA count from 7 tiny inputs to 2.
    acts = jnp.stack([query, key, value], axis=0).reshape(3, B * S, E)
    wts = jnp.stack([wk, wq, wv, wc], axis=0)               # (4, E, NQ)

    return pl.pallas_call(
        mha_kernel,
        out_shape=jax.ShapeDtypeStruct((B, S, N_QUBITS), jnp.float32),
        grid=(1,),  # single step: the whole problem fits trivially in VMEM
        in_specs=[
            pl.BlockSpec((3, B * S, E), lambda i: (0, 0, 0)),
            pl.BlockSpec((4, E, N_QUBITS), lambda i: (0, 0, 0)),
        ],
        out_specs=pl.BlockSpec((B, S, N_QUBITS), lambda i: (0, 0, 0)),
        compiler_params=pltpu.CompilerParams(
            dimension_semantics=("arbitrary",)),
    )(acts, wts)


# Pure-JAX reference for validation (same surrogate semantics).
def reference(query, key, value, wk, wq, wv, wc):
    B, S, E = query.shape
    Q = jnp.tanh(query @ wk).reshape(B, S, NUM_HEADS, DIM_K).transpose(0, 2, 1, 3)
    K = jnp.tanh(key   @ wq).reshape(B, S, NUM_HEADS, DIM_K).transpose(0, 2, 1, 3)
    V = jnp.tanh(value @ wv).reshape(B, S, NUM_HEADS, DIM_K).transpose(0, 2, 1, 3)
    scores = jnp.einsum("bhqd,bhkd->bhqk", Q, K) / math.sqrt(DIM_K)
    p = jax.nn.softmax(scores, axis=-1)
    x = jnp.einsum("bhqk,bhkd->bhqd", p, V)
    x = x.transpose(0, 2, 1, 3).reshape(B, S, E)
    return jnp.tanh(x @ wc)


if __name__ == "__main__":
    root = jax.random.PRNGKey(0)
    kq, kk, kv, k1, k2, k3, k4 = jax.random.split(root, 7)

    query = jax.random.normal(kq, (BATCH, SEQ, EMBED_DIM), dtype=jnp.float32)
    key   = jax.random.normal(kk, (BATCH, SEQ, EMBED_DIM), dtype=jnp.float32)
    value = jax.random.normal(kv, (BATCH, SEQ, EMBED_DIM), dtype=jnp.float32)

    w_scale = 1.0 / math.sqrt(EMBED_DIM)
    wk = jax.random.normal(k1, (EMBED_DIM, N_QUBITS), dtype=jnp.float32) * w_scale
    wq = jax.random.normal(k2, (EMBED_DIM, N_QUBITS), dtype=jnp.float32) * w_scale
    wv = jax.random.normal(k3, (EMBED_DIM, N_QUBITS), dtype=jnp.float32) * w_scale
    wc = jax.random.normal(k4, (EMBED_DIM, N_QUBITS), dtype=jnp.float32) * w_scale

    out = multihead_attention(query, key, value, wk, wq, wv, wc)
    out = jax.block_until_ready(out)

    ref = reference(query, key, value, wk, wq, wv, wc)
    # Tolerance accommodates MXU accumulation-order / precision differences vs
    # the XLA-compiled reference path; still far tighter than any logic bug.
    np.testing.assert_allclose(np.asarray(out), np.asarray(ref),
                               rtol=1e-3, atol=1e-3)

    print("KERNEL_OK")
</pallas_src>

<mosaic_0001>
module attributes {stable_mosaic.version = 11 : i64} {
  func.func @mha_kernel(%arg0: i32, %arg1: memref<3x16x32xf32, #tpu.memory_space<vmem>>, %arg2: memref<4x32x32xf32, #tpu.memory_space<vmem>>, %arg3: memref<2x8x32xf32, #tpu.memory_space<vmem>>) attributes {dimension_semantics = [#tpu.dimension_semantics<arbitrary>], iteration_bounds = array<i64: 1>, scalar_prefetch = 0 : i64, scratch_operands = 0 : i64, tpu.core_type = #tpu.core_type<tc>, window_params = [{pipeline_mode = #tpu.pipeline_mode<synchronous>, transform_indices = @transform_0, window_bounds = array<i64: 3, 16, 32>}, {pipeline_mode = #tpu.pipeline_mode<synchronous>, transform_indices = @transform_1, window_bounds = array<i64: 4, 32, 32>}, {pipeline_mode = #tpu.pipeline_mode<synchronous>, transform_indices = @transform_2, window_bounds = array<i64: 2, 8, 32>}]} {
    %c0 = arith.constant 0 : index
    %c0_0 = arith.constant 0 : index
    %c0_1 = arith.constant 0 : index
    %0 = vector.load %arg1[%c0, %c0_0, %c0_1] : memref<3x16x32xf32, #tpu.memory_space<vmem>>, vector<3x16x32xf32>
    %c0_2 = arith.constant 0 : index
    %c0_3 = arith.constant 0 : index
    %c0_4 = arith.constant 0 : index
    %1 = vector.load %arg2[%c0_2, %c0_3, %c0_4] : memref<4x32x32xf32, #tpu.memory_space<vmem>>, vector<4x32x32xf32>
    %2 = vector.extract_strided_slice %1 {offsets = [0, 0, 0], sizes = [3, 32, 32], strides = [1, 1, 1]} : vector<4x32x32xf32> to vector<3x32x32xf32>
    %cst = arith.constant dense<0.000000e+00> : vector<3x16x32xf32>
    %3 = tpu.matmul %0, %2, %cst {dimension_numbers = #tpu.dot_dimension_numbers<[2], [1], [1], [2], [0, 0, 0, 1, 1, 2], [0], [0]>} : vector<3x16x32xf32>, vector<3x32x32xf32>, vector<3x16x32xf32> -> vector<3x16x32xf32>
    %4 = math.tanh %3 : vector<3x16x32xf32>
    %5 = vector.shape_cast %4 : vector<3x16x32xf32> to vector<3x2x8x4x8xf32>
    %6 = tpu.transpose %5, [0, 1, 3, 2, 4] : vector<3x2x8x4x8xf32> -> vector<3x2x4x8x8xf32>
    %7 = vector.shape_cast %6 : vector<3x2x4x8x8xf32> to vector<3x8x8x8xf32>
    %8 = vector.extract_strided_slice %7 {offsets = [0, 0, 0, 0], sizes = [1, 8, 8, 8], strides = [1, 1, 1, 1]} : vector<3x8x8x8xf32> to vector<1x8x8x8xf32>
    %9 = vector.shape_cast %8 : vector<1x8x8x8xf32> to vector<8x8x8xf32>
    %10 = vector.extract_strided_slice %7 {offsets = [1, 0, 0, 0], sizes = [1, 8, 8, 8], strides = [1, 1, 1, 1]} : vector<3x8x8x8xf32> to vector<1x8x8x8xf32>
    %11 = vector.shape_cast %10 : vector<1x8x8x8xf32> to vector<8x8x8xf32>
    %12 = vector.extract_strided_slice %7 {offsets = [2, 0, 0, 0], sizes = [1, 8, 8, 8], strides = [1, 1, 1, 1]} : vector<3x8x8x8xf32> to vector<1x8x8x8xf32>
    %13 = vector.shape_cast %12 : vector<1x8x8x8xf32> to vector<8x8x8xf32>
    %cst_5 = arith.constant dense<0.000000e+00> : vector<8x8x8xf32>
    %14 = tpu.matmul %9, %11, %cst_5 {dimension_numbers = #tpu.dot_dimension_numbers<[2], [2], [1], [1], [0, 0, 0, 1, 1, 1], [0], [0]>} : vector<8x8x8xf32>, vector<8x8x8xf32>, vector<8x8x8xf32> -> vector<8x8x8xf32>
    %cst_6 = arith.constant 0.353553385 : f32
    %15 = vector.broadcast %cst_6 : f32 to vector<8x8x8xf32>
    %16 = arith.mulf %14, %15 : vector<8x8x8xf32>
    %cst_7 = arith.constant dense<0xFF800000> : vector<8x8xf32>
    %17 = vector.multi_reduction <maximumf>, %16, %cst_7 [2] : vector<8x8x8xf32> to vector<8x8xf32>
    %18 = vector.shape_cast %17 : vector<8x8xf32> to vector<8x8x1xf32>
    %19 = vector.broadcast %18 : vector<8x8x1xf32> to vector<8x8x8xf32>
    %20 = arith.subf %16, %19 : vector<8x8x8xf32>
    %21 = math.exp %20 : vector<8x8x8xf32>
    %cst_8 = arith.constant dense<0.000000e+00> : vector<8x8xf32>
    %22 = vector.multi_reduction <add>, %21, %cst_8 [2] : vector<8x8x8xf32> to vector<8x8xf32>
    %23 = vector.shape_cast %22 : vector<8x8xf32> to vector<8x8x1xf32>
    %24 = tpu.reciprocal %23 : vector<8x8x1xf32> -> vector<8x8x1xf32>
    %25 = vector.broadcast %24 : vector<8x8x1xf32> to vector<8x8x8xf32>
    %26 = arith.mulf %21, %25 : vector<8x8x8xf32>
    %cst_9 = arith.constant dense<0.000000e+00> : vector<8x8x8xf32>
    %27 = tpu.matmul %26, %13, %cst_9 {dimension_numbers = #tpu.dot_dimension_numbers<[2], [1], [1], [2], [0, 0, 0, 1, 1, 2], [0], [0]>} : vector<8x8x8xf32>, vector<8x8x8xf32>, vector<8x8x8xf32> -> vector<8x8x8xf32>
    %28 = vector.shape_cast %27 : vector<8x8x8xf32> to vector<2x4x8x8xf32>
    %29 = vector.extract_strided_slice %1 {offsets = [3, 0, 0], sizes = [1, 32, 32], strides = [1, 1, 1]} : vector<4x32x32xf32> to vector<1x32x32xf32>
    %30 = vector.shape_cast %29 : vector<1x32x32xf32> to vector<32x32xf32>
    %31 = vector.shape_cast %30 : vector<32x32xf32> to vector<4x8x32xf32>
    %cst_10 = arith.constant dense<0.000000e+00> : vector<4x2x8x32xf32>
    %32 = tpu.matmul %28, %31, %cst_10 {dimension_numbers = #tpu.dot_dimension_numbers<[3], [1], [0, 2], [2], [0, 1, 0, 0, 0, 2, 1, 2], [1], [0]>} : vector<2x4x8x8xf32>, vector<4x8x32xf32>, vector<4x2x8x32xf32> -> vector<4x2x8x32xf32>
    %cst_11 = arith.constant dense<0.000000e+00> : vector<2x8x32xf32>
    %33 = vector.multi_reduction <add>, %32, %cst_11 [0] : vector<4x2x8x32xf32> to vector<2x8x32xf32>
    %34 = math.tanh %33 : vector<2x8x32xf32>
    %c0_12 = arith.constant 0 : index
    %c0_13 = arith.constant 0 : index
    %c0_14 = arith.constant 0 : index
    %35 = vector.load %arg3[%c0_12, %c0_13, %c0_14] : memref<2x8x32xf32, #tpu.memory_space<vmem>>, vector<2x8x32xf32>
    tpu.vector_store %arg3[%c0_12, %c0_13, %c0_14], %34 {strides = array<i32>} : memref<2x8x32xf32, #tpu.memory_space<vmem>>, vector<2x8x32xf32>,
    return
  }
  func.func @transform_0(%arg0: i32) -> (i32, i32, i32) {
    %c0_i32 = arith.constant 0 : i32
    %c0_i32_0 = arith.constant 0 : i32
    %c0_i32_1 = arith.constant 0 : i32
    %c0_i32_2 = arith.constant 0 : i32
    return %c0_i32, %c0_i32_0, %c0_i32_1 : i32, i32, i32
  }
  func.func @transform_1(%arg0: i32) -> (i32, i32, i32) {
    %c0_i32 = arith.constant 0 : i32
    %c0_i32_0 = arith.constant 0 : i32
    %c0_i32_1 = arith.constant 0 : i32
    %c0_i32_2 = arith.constant 0 : i32
    return %c0_i32, %c0_i32_0, %c0_i32_1 : i32, i32, i32
  }
  func.func @transform_2(%arg0: i32) -> (i32, i32, i32) {
    %c0_i32 = arith.constant 0 : i32
    %c0_i32_0 = arith.constant 0 : i32
    %c0_i32_1 = arith.constant 0 : i32
    %c0_i32_2 = arith.constant 0 : i32
    return %c0_i32, %c0_i32_0, %c0_i32_1 : i32, i32, i32
  }
}

</mosaic_0001>

<llo_original>
// kernel: tpu_custom_call.1
$region0: #{tpu_custom_call.1}
  #allocation0 [shape = 'u32[]', space=smem, size = 0x4, offset = 0x4, fixed_abs, tag = 'smem constant byte address 0x4 - core index']
  #allocation1 [shape = 'u32[144,128]{1,0:T(1,128)}', space=vmem, size = 0x12000, scoped, tag = 'internal scratch']
  %s0 = inlined_call_operand.hbm [shape: f32[3,16,32], index: 0, kind: input, shape index: {}]
  %s1 = inlined_call_operand.hbm [shape: f32[4,32,32], index: 1, kind: input, shape index: {}]
  %s2 = inlined_call_operand.hbm [shape: f32[2,8,32], index: 2, kind: output, shape index: {}]
  %s3 = sld [smem:[#allocation0]]
  $region26: #{tpu_custom_call.1} parent=0
    _
  %s5 = ssub.s32 1, %s3
  %s6 = scalar_select 0, %s5, %s3
  $region1: #{tpu_custom_call.1} parent=0
    #allocation2 [shape = 'u8[24576]{0}', space=vmem, size = 0x6000, scoped, tag = 'input window, operand 0, single buffered']
    #allocation3 [shape = 's32[1]{0}', space=sflag, size = 0x4, scoped, tag = 'scoped memory for tpu_custom_call.1']
    #allocation4 [shape = 's32[1]{0}', space=sflag, size = 0x4, scoped, tag = 'scoped memory for tpu_custom_call.1']
    #allocation5 [shape = 'u8[65536]{0}', space=vmem, size = 0x10000, scoped, tag = 'input window, operand 1, single buffered']
    #allocation6 [shape = 's32[1]{0}', space=sflag, size = 0x4, scoped, tag = 'scoped memory for tpu_custom_call.1']
    #allocation7 [shape = 'u8[8192]{0}', space=vmem, size = 0x2000, scoped, tag = 'output window, operand 0, single buffered']
    %7 = vsyncpa [#allocation3], 0
    %8 = vsyncpa [#allocation6], 0
    %9 = vsyncpa [#allocation4], 0
    // Predicated region
    $region2: #{tpu_custom_call.1} parent=1 // pred_check
      _
    $region3: #{tpu_custom_call.1} parent=1 // pred_check_branch
      %11 = sbr.rel (0) target = $region5
    $region4: #{tpu_custom_call.1} parent=1 // pred_region
      %s13 = ssub.s32 768, 768
      %14 = vsyncadd [#allocation3], %s13
      %s15 = sshll.u32 [#allocation2], 4
      %s16 = int_to_ptr.vmem [resolvable:$true] %s15
      %21 = dma.hbm_to_vmem [thread:$0]  %s0, 768, %s16, [#allocation3], 128, 128, 8
    $region5: #{tpu_custom_call.1} parent=1 // pred_fallthru
      _
    // Predicated region
    $region6: #{tpu_custom_call.1} parent=1 // pred_check
      _
    $region7: #{tpu_custom_call.1} parent=1 // pred_check_branch
      %23 = sbr.rel (0) target = $region9
    $region8: #{tpu_custom_call.1} parent=1 // pred_region
      %s25 = ssub.s32 2048, 2048
      %26 = vsyncadd [#allocation6], %s25
      %s27 = sshll.u32 [#allocation5], 4
      %s28 = int_to_ptr.vmem [resolvable:$true] %s27
      %33 = dma.hbm_to_vmem [thread:$0]  %s1, 2048, %s28, [#allocation6], 128, 128, 8
    $region9: #{tpu_custom_call.1} parent=1 // pred_fallthru
      _
    // Predicated region
    $region10: #{tpu_custom_call.1} parent=1 // pred_check
      _
    $region11: #{tpu_custom_call.1} parent=1 // pred_check_branch
      %35 = sbr.rel (0) target = $region13
    $region12: #{tpu_custom_call.1} parent=1 // pred_region
      %36 = dma.done [#allocation3], 768
    $region13: #{tpu_custom_call.1} parent=1 // pred_fallthru
      _
    // Predicated region
    $region14: #{tpu_custom_call.1} parent=1 // pred_check
      _
    $region15: #{tpu_custom_call.1} parent=1 // pred_check_branch
      %38 = sbr.rel (0) target = $region17
    $region16: #{tpu_custom_call.1} parent=1 // pred_region
      %39 = dma.done [#allocation6], 2048
    $region17: #{tpu_custom_call.1} parent=1 // pred_fallthru
      _
    %v40 = vld [vmem:[#allocation2] sm:$0xff]
    %v41 = vld [vmem:[#allocation2 + $0x8] sm:$0xff]
    %v42 = vld [vmem:[#allocation2 + $0x10] sm:$0xff]
    %v43 = vld [vmem:[#allocation2 + $0x18] sm:$0xff]
    %v44 = vld [vmem:[#allocation2 + $0x20] sm:$0xff]
    %v45 = vld [vmem:[#allocation2 + $0x28] sm:$0xff]
    %v46 = vld [vmem:[#allocation5] sm:$0xff]
    %v47 = vld [vmem:[#allocation5 + $0x8] sm:$0xff]
    %v48 = vld [vmem:[#allocation5 + $0x10] sm:$0xff]
    %v49 = vld [vmem:[#allocation5 + $0x18] sm:$0xff]
    %v50 = vld [vmem:[#allocation5 + $0x20] sm:$0xff]
    %v51 = vld [vmem:[#allocation5 + $0x28] sm:$0xff]
    %v52 = vld [vmem:[#allocation5 + $0x30] sm:$0xff]
    %v53 = vld [vmem:[#allocation5 + $0x38] sm:$0xff]
    %v54 = vld [vmem:[#allocation5 + $0x40] sm:$0xff]
    %v55 = vld [vmem:[#allocation5 + $0x48] sm:$0xff]
    %v56 = vld [vmem:[#allocation5 + $0x50] sm:$0xff]
    %v57 = vld [vmem:[#allocation5 + $0x58] sm:$0xff]
    %v58 = vld [vmem:[#allocation5 + $0x60] sm:$0xff]
    %v59 = vld [vmem:[#allocation5 + $0x68] sm:$0xff]
    %v60 = vld [vmem:[#allocation5 + $0x70] sm:$0xff]
    %v61 = vld [vmem:[#allocation5 + $0x78] sm:$0xff]
    %vm62 = vcmask 261120
    %v64 = vsel %vm62, %v40, 0
    %v67 = vsel %vm62, %v41, 0
    %69 = vmatprep.subr.mxu0 0.0
    %70 = vmatpush1.msra.mxu0 %v46
    %71 = vmatprep.subr.mxu0 0.0
    %72 = vmatpush1.msra.mxu0 %v47
    %73 = vmatprep.subr.mxu0 0.0
    %74 = vmatpush1.msra.mxu0 %v48
    %75 = vmatprep.subr.mxu0 0.0
    %76 = vmatpush1.msra.mxu0 %v49
    %77 = vmatprep.subr.mxu0 0.0
    %78 = vmatpush1.msra.mxu0 0.0
    %79 = vmatprep.subr.mxu0 0.0
    %80 = vmatpush1.msra.mxu0 0.0
    %81 = vmatprep.subr.mxu0 0.0
    %82 = vmatpush1.msra.mxu0 0.0
    %83 = vmatprep.subr.mxu0 0.0
    %84 = vmatpush1.msra.mxu0 0.0
    %85 = vmatprep.subr.mxu0 0.0
    %86 = vmatpush1.msra.mxu0 0.0
    %87 = vmatprep.subr.mxu0 0.0
    %88 = vmatpush1.msra.mxu0 0.0
    %89 = vmatprep.subr.mxu0 0.0
    %90 = vmatpush1.msra.mxu0 0.0
    %91 = vmatprep.subr.mxu0 0.0
    %92 = vmatpush1.msra.mxu0 0.0
    %93 = vmatprep.subr.mxu0 0.0
    %94 = vmatpush1.msra.mxu0 0.0
    %95 = vmatprep.subr.mxu0 0.0
    %96 = vmatpush1.msra.mxu0 0.0
    %97 = vmatprep.subr.mxu0 0.0
    %98 = vmatpush1.msra.mxu0 0.0
    %99 = vmatprep.subr.mxu0 0.0
    %100 = vmatpush1.msra.mxu0 0.0
    %101 = vmatprep.subr.mxu0 0.0
    %102 = vmatpush1.msra.mxu0 0.0
    %103 = vmatprep.subr.mxu0 0.0
    %104 = vmatpush1.msra.mxu0 0.0
    %105 = vmatprep.subr.mxu0 0.0
    %106 = vmatpush1.msra.mxu0 0.0
    %107 = vmatprep.subr.mxu0 0.0
    %108 = vmatpush1.msra.mxu0 0.0
    %109 = vmatprep.subr.mxu0 0.0
    %110 = vmatpush1.msra.mxu0 0.0
    %111 = vmatprep.subr.mxu0 0.0
    %112 = vmatpush1.msra.mxu0 0.0
    %113 = vmatprep.subr.mxu0 0.0
    %114 = vmatpush1.msra.mxu0 0.0
    %115 = vmatprep.subr.mxu0 0.0
    %116 = vmatpush1.msra.mxu0 0.0
    %117 = vmatprep.subr.mxu0 0.0
    %118 = vmatpush1.msra.mxu0 0.0
    %119 = vmatprep.subr.mxu0 0.0
    %120 = vmatpush1.msra.mxu0 0.0
    %121 = vmatprep.subr.mxu0 0.0
    %122 = vmatpush1.msra.mxu0 0.0
    %123 = vmatprep.subr.mxu0 0.0
    %124 = vmatpush1.msra.mxu0 0.0
    %125 = vmatprep.subr.mxu0 0.0
    %126 = vmatpush1.msra.mxu0 0.0
    %127 = vmatprep.subr.mxu0 0.0
    %128 = vmatpush1.msra.mxu0 0.0
    %129 = vmatprep.subr.mxu0 0.0
    %130 = vmatpush1.msra.mxu0 0.0
    %131 = vmatprep.subr.mxu0 0.0
    %132 = vmatpush1.msra.mxu0 0.0
    %133 = vmatprep.mubr.f32.mxu0 0.0
    %134 = vmatmul.mubr.f32.gmra.mrb[0].mxu0 %v64
    %v135 = vpop.f32.mrb[0].mxu0
    %v136 = vadd.f32 0.0, %v135
    %v137 = vpop.f32.mrb[0].mxu0
    %138 = vmatprep.mubr.f32.mxu0 0.0
    %139 = vmatmul.mubr.f32.gmra.mrb[0].mxu0 %v67
    %v140 = vpop.f32.mrb[0].mxu0
    %v141 = vadd.f32 0.0, %v140
    %v142 = vpop.f32.mrb[0].mxu0
    %143 = vdwg.mxu0
    %v145 = vsel %vm62, %v42, 0
    %v148 = vsel %vm62, %v43, 0
    %150 = vmatprep.subr.mxu0 0.0
    %151 = vmatpush1.msra.mxu0 %v50
    %152 = vmatprep.subr.mxu0 0.0
    %153 = vmatpush1.msra.mxu0 %v51
    %154 = vmatprep.subr.mxu0 0.0
    %155 = vmatpush1.msra.mxu0 %v52
    %156 = vmatprep.subr.mxu0 0.0
    %157 = vmatpush1.msra.mxu0 %v53
    %158 = vmatprep.subr.mxu0 0.0
    %159 = vmatpush1.msra.mxu0 0.0
    %160 = vmatprep.subr.mxu0 0.0
    %161 = vmatpush1.msra.mxu0 0.0
    %162 = vmatprep.subr.mxu0 0.0
    %163 = vmatpush1.msra.mxu0 0.0
    %164 = vmatprep.subr.mxu0 0.0
    %165 = vmatpush1.msra.mxu0 0.0
    %166 = vmatprep.subr.mxu0 0.0
    %167 = vmatpush1.msra.mxu0 0.0
    %168 = vmatprep.subr.mxu0 0.0
    %169 = vmatpush1.msra.mxu0 0.0
    %170 = vmatprep.subr.mxu0 0.0
    %171 = vmatpush1.msra.mxu0 0.0
    %172 = vmatprep.subr.mxu0 0.0
    %173 = vmatpush1.msra.mxu0 0.0
    %174 = vmatprep.subr.mxu0 0.0
    %175 = vmatpush1.msra.mxu0 0.0
    %176 = vmatprep.subr.mxu0 0.0
    %177 = vmatpush1.msra.mxu0 0.0
    %178 = vmatprep.subr.mxu0 0.0
    %179 = vmatpush1.msra.mxu0 0.0
    %180 = vmatprep.subr.mxu0 0.0
    %181 = vmatpush1.msra.mxu0 0.0
    %182 = vmatprep.subr.mxu0 0.0
    %183 = vmatpush1.msra.mxu0 0.0
    %184 = vmatprep.subr.mxu0 0.0
    %185 = vmatpush1.msra.mxu0 0.0
    %186 = vmatprep.subr.mxu0 0.0
    %187 = vmatpush1.msra.mxu0 0.0
    %188 = vmatprep.subr.mxu0 0.0
    %189 = vmatpush1.msra.mxu0 0.0
    %190 = vmatprep.subr.mxu0 0.0
    %191 = vmatpush1.msra.mxu0 0.0
    %192 = vmatprep.subr.mxu0 0.0
    %193 = vmatpush1.msra.mxu0 0.0
    %194 = vmatprep.subr.mxu0 0.0
    %195 = vmatpush1.msra.mxu0 0.0
    %196 = vmatprep.subr.mxu0 0.0
    %197 = vmatpush1.msra.mxu0 0.0
    %198 = vmatprep.subr.mxu0 0.0
    %199 = vmatpush1.msra.mxu0 0.0
    %200 = vmatprep.subr.mxu0 0.0
    %201 = vmatpush1.msra.mxu0 0.0
    %202 = vmatprep.subr.mxu0 0.0
    %203 = vmatpush1.msra.mxu0 0.0
    %204 = vmatprep.subr.mxu0 0.0
    %205 = vmatpush1.msra.mxu0 0.0
    %206 = vmatprep.subr.mxu0 0.0
    %207 = vmatpush1.msra.mxu0 0.0
    %208 = vmatprep.subr.mxu0 0.0
    %209 = vmatpush1.msra.mxu0 0.0
    %210 = vmatprep.subr.mxu0 0.0
    %211 = vmatpush1.msra.mxu0 0.0
    %212 = vmatprep.subr.mxu0 0.0
    %213 = vmatpush1.msra.mxu0 0.0
    %214 = vmatprep.mubr.f32.mxu0 0.0
    %215 = vmatmul.mubr.f32.gmra.mrb[0].mxu0 %v145
    %v216 = vpop.f32.mrb[0].mxu0
    %v217 = vadd.f32 0.0, %v216
    %v218 = vpop.f32.mrb[0].mxu0
    %219 = vmatprep.mubr.f32.mxu0 0.0
    %220 = vmatmul.mubr.f32.gmra.mrb[0].mxu0 %v148
    %v221 = vpop.f32.mrb[0].mxu0
    %v222 = vadd.f32 0.0, %v221
    %v223 = vpop.f32.mrb[0].mxu0
    %224 = vdwg.mxu0
    %v226 = vsel %vm62, %v44, 0
    %v229 = vsel %vm62, %v45, 0
    %231 = vmatprep.subr.mxu0 0.0
    %232 = vmatpush1.msra.mxu0 %v54
    %233 = vmatprep.subr.mxu0 0.0
    %234 = vmatpush1.msra.mxu0 %v55
    %235 = vmatprep.subr.mxu0 0.0
    %236 = vmatpush1.msra.mxu0 %v56
    %237 = vmatprep.subr.mxu0 0.0
    %238 = vmatpush1.msra.mxu0 %v57
    %239 = vmatprep.subr.mxu0 0.0
    %240 = vmatpush1.msra.mxu0 0.0
    %241 = vmatprep.subr.mxu0 0.0
    %242 = vmatpush1.msra.mxu0 0.0
    %243 = vmatprep.subr.mxu0 0.0
    %244 = vmatpush1.msra.mxu0 0.0
    %245 = vmatprep.subr.mxu0 0.0
    %246 = vmatpush1.msra.mxu0 0.0
    %247 = vmatprep.subr.mxu0 0.0
    %248 = vmatpush1.msra.mxu0 0.0
    %249 = vmatprep.subr.mxu0 0.0
    %250 = vmatpush1.msra.mxu0 0.0
    %251 = vmatprep.subr.mxu0 0.0
    %252 = vmatpush1.msra.mxu0 0.0
    %253 = vmatprep.subr.mxu0 0.0
    %254 = vmatpush1.msra.mxu0 0.0
    %255 = vmatprep.subr.mxu0 0.0
    %256 = vmatpush1.msra.mxu0 0.0
    %257 = vmatprep.subr.mxu0 0.0
    %258 = vmatpush1.msra.mxu0 0.0
    %259 = vmatprep.subr.mxu0 0.0
    %260 = vmatpush1.msra.mxu0 0.0
    %261 = vmatprep.subr.mxu0 0.0
    %262 = vmatpush1.msra.mxu0 0.0
    %263 = vmatprep.subr.mxu0 0.0
    %264 = vmatpush1.msra.mxu0 0.0
    %265 = vmatprep.subr.mxu0 0.0
    %266 = vmatpush1.msra.mxu0 0.0
    %267 = vmatprep.subr.mxu0 0.0
    %268 = vmatpush1.msra.mxu0 0.0
    %269 = vmatprep.subr.mxu0 0.0
    %270 = vmatpush1.msra.mxu0 0.0
    %271 = vmatprep.subr.mxu0 0.0
    %272 = vmatpush1.msra.mxu0 0.0
    %273 = vmatprep.subr.mxu0 0.0
    %274 = vmatpush1.msra.mxu0 0.0
    %275 = vmatprep.subr.mxu0 0.0
    %276 = vmatpush1.msra.mxu0 0.0
    %277 = vmatprep.subr.mxu0 0.0
    %278 = vmatpush1.msra.mxu0 0.0
    %279 = vmatprep.subr.mxu0 0.0
    %280 = vmatpush1.msra.mxu0 0.0
    %281 = vmatprep.subr.mxu0 0.0
    %282 = vmatpush1.msra.mxu0 0.0
    %283 = vmatprep.subr.mxu0 0.0
    %284 = vmatpush1.msra.mxu0 0.0
    %285 = vmatprep.subr.mxu0 0.0
    %286 = vmatpush1.msra.mxu0 0.0
    %287 = vmatprep.subr.mxu0 0.0
    %288 = vmatpush1.msra.mxu0 0.0
    %289 = vmatprep.subr.mxu0 0.0
    %290 = vmatpush1.msra.mxu0 0.0
    %291 = vmatprep.subr.mxu0 0.0
    %292 = vmatpush1.msra.mxu0 0.0
    %293 = vmatprep.subr.mxu0 0.0
    %294 = vmatpush1.msra.mxu0 0.0
    %295 = vmatprep.mubr.f32.mxu0 0.0
    %296 = vmatmul.mubr.f32.gmra.mrb[0].mxu0 %v226
    %v297 = vpop.f32.mrb[0].mxu0
    %v298 = vadd.f32 0.0, %v297
    %v299 = vpop.f32.mrb[0].mxu0
    %300 = vmatprep.mubr.f32.mxu0 0.0
    %301 = vmatmul.mubr.f32.gmra.mrb[0].mxu0 %v229
    %v302 = vpop.f32.mrb[0].mxu0
    %v303 = vadd.f32 0.0, %v302
    %v304 = vpop.f32.mrb[0].mxu0
    %305 = vdwg.mxu0
    %v306 = vtanh.pop %v136
    %v307 = vtanh.pop %v141
    %v308 = vtanh.pop %v217
    %v309 = vtanh.pop %v222
    %v310 = vtanh.pop %v298
    %v311 = vtanh.pop %v303
    %318 = vrot.lane.b32.xlu0 %v306, 120
    %v319 = vpop.permute.xlu0 %318
    %320 = vrot.lane.b32.xlu0 %v307, 120
    %v321 = vpop.permute.xlu0 %320
    %322 = vrot.lane.b32.xlu0 %v308, 120
    %v323 = vpop.permute.xlu0 %322
    %324 = vrot.lane.b32.xlu0 %v309, 120
    %v325 = vpop.permute.xlu0 %324
    %326 = vrot.lane.b32.xlu0 %v310, 120
    %v327 = vpop.permute.xlu0 %326
    %328 = vrot.lane.b32.xlu0 %v311, 120
    %v329 = vpop.permute.xlu0 %328
    %336 = vrot.lane.b32.xlu0 %v306, 112
    %v337 = vpop.permute.xlu0 %336
    %338 = vrot.lane.b32.xlu0 %v307, 112
    %v339 = vpop.permute.xlu0 %338
    %340 = vrot.lane.b32.xlu0 %v308, 112
    %v341 = vpop.permute.xlu0 %340
    %342 = vrot.lane.b32.xlu0 %v309, 112
    %v343 = vpop.permute.xlu0 %342
    %344 = vrot.lane.b32.xlu0 %v310, 112
    %v345 = vpop.permute.xlu0 %344
    %346 = vrot.lane.b32.xlu0 %v311, 112
    %v347 = vpop.permute.xlu0 %346
    %354 = vrot.lane.b32.xlu0 %v306, 104
    %v355 = vpop.permute.xlu0 %354
    %356 = vrot.lane.b32.xlu0 %v307, 104
    %v357 = vpop.permute.xlu0 %356
    %358 = vrot.lane.b32.xlu0 %v308, 104
    %v359 = vpop.permute.xlu0 %358
    %360 = vrot.lane.b32.xlu0 %v309, 104
    %v361 = vpop.permute.xlu0 %360
    %362 = vrot.lane.b32.xlu0 %v310, 104
    %v363 = vpop.permute.xlu0 %362
    %364 = vrot.lane.b32.xlu0 %v311, 104
    %v365 = vpop.permute.xlu0 %364
    %v372 = vcombine.low %v306, %v337
    %v373 = vcombine.high %v306, %v337
    %v375 = vunpack.c.l.s4 1983009808
    %v376 = vunpack.c.0.s8 %v375
    %v377 = vlaneseq
    %v378 = vshrl.u32 %v377, 7
    %v379 = vsub.s32 %v376, %v378
    %v380 = vrot.slane %v372, %v379
    %v382 = vunpack.c.l.s4 1983009808
    %v383 = vunpack.c.0.s8 %v382
    %v384 = vlaneseq
    %v385 = vshrl.u32 %v384, 7
    %v386 = vsub.s32 %v383, %v385
    %v387 = vrot.slane %v373, %v386
    %v388 = vcombine.low %v319, %v355
    %v389 = vcombine.high %v319, %v355
    %v391 = vunpack.c.l.s4 1983009808
    %v392 = vunpack.c.0.s8 %v391
    %v393 = vlaneseq
    %v394 = vshrl.u32 %v393, 7
    %v395 = vsub.s32 %v392, %v394
    %v396 = vrot.slane %v388, %v395
    %v398 = vunpack.c.l.s4 1983009808
    %v399 = vunpack.c.0.s8 %v398
    %v400 = vlaneseq
    %v401 = vshrl.u32 %v400, 7
    %v402 = vsub.s32 %v399, %v401
    %v403 = vrot.slane %v389, %v402
    %v404 = vcombine.low %v380, %v396
    %v405 = vcombine.high %v380, %v396
    %v407 = vunpack.c.l.s4 1934713408
    %v408 = vunpack.c.0.s8 %v407
    %v409 = vlaneseq
    %v410 = vshrl.u32 %v409, 7
    %v411 = vsub.s32 %v408, %v410
    %v412 = vrot.slane %v404, %v411
    %v414 = vunpack.c.l.s4 1934713408
    %v415 = vunpack.c.0.s8 %v414
    %v416 = vlaneseq
    %v417 = vshrl.u32 %v416, 7
    %v418 = vsub.s32 %v415, %v417
    %v419 = vrot.slane %v405, %v418
    %v420 = vcombine.low %v387, %v403
    %v421 = vcombine.high %v387, %v403
    %v423 = vunpack.c.l.s4 1934713408
    %v424 = vunpack.c.0.s8 %v423
    %v425 = vlaneseq
    %v426 = vshrl.u32 %v425, 7
    %v427 = vsub.s32 %v424, %v426
    %v428 = vrot.slane %v420, %v427
    %v430 = vunpack.c.l.s4 1934713408
    %v431 = vunpack.c.0.s8 %v430
    %v432 = vlaneseq
    %v433 = vshrl.u32 %v432, 7
    %v434 = vsub.s32 %v431, %v433
    %v435 = vrot.slane %v421, %v434
    %v436 = vcombine.high %v412, 0.0
    %v437 = vcombine.high %v419, 0.0
    %v438 = vcombine.high %v428, 0.0
    %v439 = vcombine.high %v435, 0.0
    %v440 = vcombine.low %v307, %v339
    %v441 = vcombine.high %v307, %v339
    %v443 = vunpack.c.l.s4 1983009808
    %v444 = vunpack.c.0.s8 %v443
    %v445 = vlaneseq
    %v446 = vshrl.u32 %v445, 7
    %v447 = vsub.s32 %v444, %v446
    %v448 = vrot.slane %v440, %v447
    %v450 = vunpack.c.l.s4 1983009808
    %v451 = vunpack.c.0.s8 %v450
    %v452 = vlaneseq
    %v453 = vshrl.u32 %v452, 7
    %v454 = vsub.s32 %v451, %v453
    %v455 = vrot.slane %v441, %v454
    %v456 = vcombine.low %v321, %v357
    %v457 = vcombine.high %v321, %v357
    %v459 = vunpack.c.l.s4 1983009808
    %v460 = vunpack.c.0.s8 %v459
    %v461 = vlaneseq
    %v462 = vshrl.u32 %v461, 7
    %v463 = vsub.s32 %v460, %v462
    %v464 = vrot.slane %v456, %v463
    %v466 = vunpack.c.l.s4 1983009808
    %v467 = vunpack.c.0.s8 %v466
    %v468 = vlaneseq
    %v469 = vshrl.u32 %v468, 7
    %v470 = vsub.s32 %v467, %v469
    %v471 = vrot.slane %v457, %v470
    %v472 = vcombine.low %v448, %v464
    %v473 = vcombine.high %v448, %v464
    %v475 = vunpack.c.l.s4 1934713408
    %v476 = vunpack.c.0.s8 %v475
    %v477 = vlaneseq
    %v478 = vshrl.u32 %v477, 7
    %v479 = vsub.s32 %v476, %v478
    %v480 = vrot.slane %v472, %v479
    %v482 = vunpack.c.l.s4 1934713408
    %v483 = vunpack.c.0.s8 %v482
    %v484 = vlaneseq
    %v485 = vshrl.u32 %v484, 7
    %v486 = vsub.s32 %v483, %v485
    %v487 = vrot.slane %v473, %v486
    %v488 = vcombine.low %v455, %v471
    %v489 = vcombine.high %v455, %v471
    %v491 = vunpack.c.l.s4 1934713408
    %v492 = vunpack.c.0.s8 %v491
    %v493 = vlaneseq
    %v494 = vshrl.u32 %v493, 7
    %v495 = vsub.s32 %v492, %v494
    %v496 = vrot.slane %v488, %v495
    %v498 = vunpack.c.l.s4 1934713408
    %v499 = vunpack.c.0.s8 %v498
    %v500 = vlaneseq
    %v501 = vshrl.u32 %v500, 7
    %v502 = vsub.s32 %v499, %v501
    %v503 = vrot.slane %v489, %v502
    %v504 = vcombine.high %v480, 0.0
    %v505 = vcombine.high %v487, 0.0
    %v506 = vcombine.high %v496, 0.0
    %v507 = vcombine.high %v503, 0.0
    %v508 = vcombine.low %v308, %v341
    %v509 = vcombine.high %v308, %v341
    %v511 = vunpack.c.l.s4 1983009808
    %v512 = vunpack.c.0.s8 %v511
    %v513 = vlaneseq
    %v514 = vshrl.u32 %v513, 7
    %v515 = vsub.s32 %v512, %v514
    %v516 = vrot.slane %v508, %v515
    %v518 = vunpack.c.l.s4 1983009808
    %v519 = vunpack.c.0.s8 %v518
    %v520 = vlaneseq
    %v521 = vshrl.u32 %v520, 7
    %v522 = vsub.s32 %v519, %v521
    %v523 = vrot.slane %v509, %v522
    %v524 = vcombine.low %v323, %v359
    %v525 = vcombine.high %v323, %v359
    %v527 = vunpack.c.l.s4 1983009808
    %v528 = vunpack.c.0.s8 %v527
    %v529 = vlaneseq
    %v530 = vshrl.u32 %v529, 7
    %v531 = vsub.s32 %v528, %v530
    %v532 = vrot.slane %v524, %v531
    %v534 = vunpack.c.l.s4 1983009808
    %v535 = vunpack.c.0.s8 %v534
    %v536 = vlaneseq
    %v537 = vshrl.u32 %v536, 7
    %v538 = vsub.s32 %v535, %v537
    %v539 = vrot.slane %v525, %v538
    %v540 = vcombine.low %v516, %v532
    %v541 = vcombine.high %v516, %v532
    %v543 = vunpack.c.l.s4 1934713408
    %v544 = vunpack.c.0.s8 %v543
    %v545 = vlaneseq
    %v546 = vshrl.u32 %v545, 7
    %v547 = vsub.s32 %v544, %v546
    %v548 = vrot.slane %v540, %v547
    %v550 = vunpack.c.l.s4 1934713408
    %v551 = vunpack.c.0.s8 %v550
    %v552 = vlaneseq
    %v553 = vshrl.u32 %v552, 7
    %v554 = vsub.s32 %v551, %v553
    %v555 = vrot.slane %v541, %v554
    %v556 = vcombine.low %v523, %v539
    %v557 = vcombine.high %v523, %v539
    %v559 = vunpack.c.l.s4 1934713408
    %v560 = vunpack.c.0.s8 %v559
    %v561 = vlaneseq
    %v562 = vshrl.u32 %v561, 7
    %v563 = vsub.s32 %v560, %v562
    %v564 = vrot.slane %v556, %v563
    %v566 = vunpack.c.l.s4 1934713408
    %v567 = vunpack.c.0.s8 %v566
    %v568 = vlaneseq
    %v569 = vshrl.u32 %v568, 7
    %v570 = vsub.s32 %v567, %v569
    %v571 = vrot.slane %v557, %v570
    %v572 = vcombine.high %v548, 0.0
    %v573 = vcombine.high %v555, 0.0
    %v574 = vcombine.high %v564, 0.0
    %v575 = vcombine.high %v571, 0.0
    %v576 = vcombine.low %v309, %v343
    %v577 = vcombine.high %v309, %v343
    %v579 = vunpack.c.l.s4 1983009808
    %v580 = vunpack.c.0.s8 %v579
    %v581 = vlaneseq
    %v582 = vshrl.u32 %v581, 7
    %v583 = vsub.s32 %v580, %v582
    %v584 = vrot.slane %v576, %v583
    %v586 = vunpack.c.l.s4 1983009808
    %v587 = vunpack.c.0.s8 %v586
    %v588 = vlaneseq
    %v589 = vshrl.u32 %v588, 7
    %v590 = vsub.s32 %v587, %v589
    %v591 = vrot.slane %v577, %v590
    %v592 = vcombine.low %v325, %v361
    %v593 = vcombine.high %v325, %v361
    %v595 = vunpack.c.l.s4 1983009808
    %v596 = vunpack.c.0.s8 %v595
    %v597 = vlaneseq
    %v598 = vshrl.u32 %v597, 7
    %v599 = vsub.s32 %v596, %v598
    %v600 = vrot.slane %v592, %v599
    %v602 = vunpack.c.l.s4 1983009808
    %v603 = vunpack.c.0.s8 %v602
    %v604 = vlaneseq
    %v605 = vshrl.u32 %v604, 7
    %v606 = vsub.s32 %v603, %v605
    %v607 = vrot.slane %v593, %v606
    %v608 = vcombine.low %v584, %v600
    %v609 = vcombine.high %v584, %v600
    %v611 = vunpack.c.l.s4 1934713408
    %v612 = vunpack.c.0.s8 %v611
    %v613 = vlaneseq
    %v614 = vshrl.u32 %v613, 7
    %v615 = vsub.s32 %v612, %v614
    %v616 = vrot.slane %v608, %v615
    %v618 = vunpack.c.l.s4 1934713408
    %v619 = vunpack.c.0.s8 %v618
    %v620 = vlaneseq
    %v621 = vshrl.u32 %v620, 7
    %v622 = vsub.s32 %v619, %v621
    %v623 = vrot.slane %v609, %v622
    %v624 = vcombine.low %v591, %v607
    %v625 = vcombine.high %v591, %v607
    %v627 = vunpack.c.l.s4 1934713408
    %v628 = vunpack.c.0.s8 %v627
    %v629 = vlaneseq
    %v630 = vshrl.u32 %v629, 7
    %v631 = vsub.s32 %v628, %v630
    %v632 = vrot.slane %v624, %v631
    %v634 = vunpack.c.l.s4 1934713408
    %v635 = vunpack.c.0.s8 %v634
    %v636 = vlaneseq
    %v637 = vshrl.u32 %v636, 7
    %v638 = vsub.s32 %v635, %v637
    %v639 = vrot.slane %v625, %v638
    %v640 = vcombine.high %v616, 0.0
    %v641 = vcombine.high %v623, 0.0
    %v642 = vcombine.high %v632, 0.0
    %v643 = vcombine.high %v639, 0.0
    %v644 = vcombine.low %v310, %v345
    %v645 = vcombine.high %v310, %v345
    %v647 = vunpack.c.l.s4 1983009808
    %v648 = vunpack.c.0.s8 %v647
    %v649 = vlaneseq
    %v650 = vshrl.u32 %v649, 7
    %v651 = vsub.s32 %v648, %v650
    %v652 = vrot.slane %v644, %v651
    %v654 = vunpack.c.l.s4 1983009808
    %v655 = vunpack.c.0.s8 %v654
    %v656 = vlaneseq
    %v657 = vshrl.u32 %v656, 7
    %v658 = vsub.s32 %v655, %v657
    %v659 = vrot.slane %v645, %v658
    %v660 = vcombine.low %v327, %v363
    %v661 = vcombine.high %v327, %v363
    %v663 = vunpack.c.l.s4 1983009808
    %v664 = vunpack.c.0.s8 %v663
    %v665 = vlaneseq
    %v666 = vshrl.u32 %v665, 7
    %v667 = vsub.s32 %v664, %v666
    %v668 = vrot.slane %v660, %v667
    %v670 = vunpack.c.l.s4 1983009808
    %v671 = vunpack.c.0.s8 %v670
    %v672 = vlaneseq
    %v673 = vshrl.u32 %v672, 7
    %v674 = vsub.s32 %v671, %v673
    %v675 = vrot.slane %v661, %v674
    %v676 = vcombine.low %v652, %v668
    %v677 = vcombine.high %v652, %v668
    %v679 = vunpack.c.l.s4 1934713408
    %v680 = vunpack.c.0.s8 %v679
    %v681 = vlaneseq
    %v682 = vshrl.u32 %v681, 7
    %v683 = vsub.s32 %v680, %v682
    %v684 = vrot.slane %v676, %v683
    %v686 = vunpack.c.l.s4 1934713408
    %v687 = vunpack.c.0.s8 %v686
    %v688 = vlaneseq
    %v689 = vshrl.u32 %v688, 7
    %v690 = vsub.s32 %v687, %v689
    %v691 = vrot.slane %v677, %v690
    %v692 = vcombine.low %v659, %v675
    %v693 = vcombine.high %v659, %v675
    %v695 = vunpack.c.l.s4 1934713408
    %v696 = vunpack.c.0.s8 %v695
    %v697 = vlaneseq
    %v698 = vshrl.u32 %v697, 7
    %v699 = vsub.s32 %v696, %v698
    %v700 = vrot.slane %v692, %v699
    %v702 = vunpack.c.l.s4 1934713408
    %v703 = vunpack.c.0.s8 %v702
    %v704 = vlaneseq
    %v705 = vshrl.u32 %v704, 7
    %v706 = vsub.s32 %v703, %v705
    %v707 = vrot.slane %v693, %v706
    %v708 = vcombine.high %v684, 0.0
    %v709 = vcombine.high %v691, 0.0
    %v710 = vcombine.high %v700, 0.0
    %v711 = vcombine.high %v707, 0.0
    %v712 = vcombine.low %v311, %v347
    %v713 = vcombine.high %v311, %v347
    %v715 = vunpack.c.l.s4 1983009808
    %v716 = vunpack.c.0.s8 %v715
    %v717 = vlaneseq
    %v718 = vshrl.u32 %v717, 7
    %v719 = vsub.s32 %v716, %v718
    %v720 = vrot.slane %v712, %v719
    %v722 = vunpack.c.l.s4 1983009808
    %v723 = vunpack.c.0.s8 %v722
    %v724 = vlaneseq
    %v725 = vshrl.u32 %v724, 7
    %v726 = vsub.s32 %v723, %v725
    %v727 = vrot.slane %v713, %v726
    %v728 = vcombine.low %v329, %v365
    %v729 = vcombine.high %v329, %v365
    %v731 = vunpack.c.l.s4 1983009808
    %v732 = vunpack.c.0.s8 %v731
    %v733 = vlaneseq
    %v734 = vshrl.u32 %v733, 7
    %v735 = vsub.s32 %v732, %v734
    %v736 = vrot.slane %v728, %v735
    %v738 = vunpack.c.l.s4 1983009808
    %v739 = vunpack.c.0.s8 %v738
    %v740 = vlaneseq
    %v741 = vshrl.u32 %v740, 7
    %v742 = vsub.s32 %v739, %v741
    %v743 = vrot.slane %v729, %v742
    %v744 = vcombine.low %v720, %v736
    %v745 = vcombine.high %v720, %v736
    %v747 = vunpack.c.l.s4 1934713408
    %v748 = vunpack.c.0.s8 %v747
    %v749 = vlaneseq
    %v750 = vshrl.u32 %v749, 7
    %v751 = vsub.s32 %v748, %v750
    %v752 = vrot.slane %v744, %v751
    %v754 = vunpack.c.l.s4 1934713408
    %v755 = vunpack.c.0.s8 %v754
    %v756 = vlaneseq
    %v757 = vshrl.u32 %v756, 7
    %v758 = vsub.s32 %v755, %v757
    %v759 = vrot.slane %v745, %v758
    %v760 = vcombine.low %v727, %v743
    %v761 = vcombine.high %v727, %v743
    %v763 = vunpack.c.l.s4 1934713408
    %v764 = vunpack.c.0.s8 %v763
    %v765 = vlaneseq
    %v766 = vshrl.u32 %v765, 7
    %v767 = vsub.s32 %v764, %v766
    %v768 = vrot.slane %v760, %v767
    %v770 = vunpack.c.l.s4 1934713408
    %v771 = vunpack.c.0.s8 %v770
    %v772 = vlaneseq
    %v773 = vshrl.u32 %v772, 7
    %v774 = vsub.s32 %v771, %v773
    %v775 = vrot.slane %v761, %v774
    %v776 = vcombine.high %v752, 0.0
    %v777 = vcombine.high %v759, 0.0
    %v778 = vcombine.high %v768, 0.0
    %v779 = vcombine.high %v775, 0.0
    %v780 = vcombine.low %v412, %v419
    %v782 = vunpack.c.l.s4 1983009808
    %v783 = vunpack.c.0.s8 %v782
    %v784 = vlaneseq
    %v785 = vshrl.u32 %v784, 7
    %v786 = vsub.s32 %v783, %v785
    %v787 = vrot.slane %v780, %v786
    %v788 = vcombine.low %v436, %v437
    %v790 = vunpack.c.l.s4 1983009808
    %v791 = vunpack.c.0.s8 %v790
    %v792 = vlaneseq
    %v793 = vshrl.u32 %v792, 7
    %v794 = vsub.s32 %v791, %v793
    %v795 = vrot.slane %v788, %v794
    %v796 = vcombine.low %v428, %v435
    %v798 = vunpack.c.l.s4 1983009808
    %v799 = vunpack.c.0.s8 %v798
    %v800 = vlaneseq
    %v801 = vshrl.u32 %v800, 7
    %v802 = vsub.s32 %v799, %v801
    %v803 = vrot.slane %v796, %v802
    %v804 = vcombine.low %v438, %v439
    %v806 = vunpack.c.l.s4 1983009808
    %v807 = vunpack.c.0.s8 %v806
    %v808 = vlaneseq
    %v809 = vshrl.u32 %v808, 7
    %v810 = vsub.s32 %v807, %v809
    %v811 = vrot.slane %v804, %v810
    %v812 = vcombine.low %v787, %v795
    %v813 = vcombine.high %v787, %v795
    %v815 = vunpack.c.l.s4 1934713408
    %v816 = vunpack.c.0.s8 %v815
    %v817 = vlaneseq
    %v818 = vshrl.u32 %v817, 7
    %v819 = vsub.s32 %v816, %v818
    %v820 = vrot.slane %v812, %v819
    %v822 = vunpack.c.l.s4 1934713408
    %v823 = vunpack.c.0.s8 %v822
    %v824 = vlaneseq
    %v825 = vshrl.u32 %v824, 7
    %v826 = vsub.s32 %v823, %v825
    %v827 = vrot.slane %v813, %v826
    %v828 = vcombine.low %v803, %v811
    %v829 = vcombine.high %v803, %v811
    %v831 = vunpack.c.l.s4 1934713408
    %v832 = vunpack.c.0.s8 %v831
    %v833 = vlaneseq
    %v834 = vshrl.u32 %v833, 7
    %v835 = vsub.s32 %v832, %v834
    %v836 = vrot.slane %v828, %v835
    %v838 = vunpack.c.l.s4 1934713408
    %v839 = vunpack.c.0.s8 %v838
    %v840 = vlaneseq
    %v841 = vshrl.u32 %v840, 7
    %v842 = vsub.s32 %v839, %v841
    %v843 = vrot.slane %v829, %v842
    %v844 = vcombine.low %v820, %v836
    %v845 = vcombine.high %v820, %v836
    %v846 = vcombine.low %v827, %v843
    %v847 = vcombine.high %v827, %v843
    %v848 = vcombine.low %v480, %v487
    %v850 = vunpack.c.l.s4 1983009808
    %v851 = vunpack.c.0.s8 %v850
    %v852 = vlaneseq
    %v853 = vshrl.u32 %v852, 7
    %v854 = vsub.s32 %v851, %v853
    %v855 = vrot.slane %v848, %v854
    %v856 = vcombine.low %v504, %v505
    %v858 = vunpack.c.l.s4 1983009808
    %v859 = vunpack.c.0.s8 %v858
    %v860 = vlaneseq
    %v861 = vshrl.u32 %v860, 7
    %v862 = vsub.s32 %v859, %v861
    %v863 = vrot.slane %v856, %v862
    %v864 = vcombine.low %v496, %v503
    %v866 = vunpack.c.l.s4 1983009808
    %v867 = vunpack.c.0.s8 %v866
    %v868 = vlaneseq
    %v869 = vshrl.u32 %v868, 7
    %v870 = vsub.s32 %v867, %v869
    %v871 = vrot.slane %v864, %v870
    %v872 = vcombine.low %v506, %v507
    %v874 = vunpack.c.l.s4 1983009808
    %v875 = vunpack.c.0.s8 %v874
    %v876 = vlaneseq
    %v877 = vshrl.u32 %v876, 7
    %v878 = vsub.s32 %v875, %v877
    %v879 = vrot.slane %v872, %v878
    %v880 = vcombine.low %v855, %v863
    %v881 = vcombine.high %v855, %v863
    %v883 = vunpack.c.l.s4 1934713408
    %v884 = vunpack.c.0.s8 %v883
    %v885 = vlaneseq
    %v886 = vshrl.u32 %v885, 7
    %v887 = vsub.s32 %v884, %v886
    %v888 = vrot.slane %v880, %v887
    %v890 = vunpack.c.l.s4 1934713408
    %v891 = vunpack.c.0.s8 %v890
    %v892 = vlaneseq
    %v893 = vshrl.u32 %v892, 7
    %v894 = vsub.s32 %v891, %v893
    %v895 = vrot.slane %v881, %v894
    %v896 = vcombine.low %v871, %v879
    %v897 = vcombine.high %v871, %v879
    %v899 = vunpack.c.l.s4 1934713408
    %v900 = vunpack.c.0.s8 %v899
    %v901 = vlaneseq
    %v902 = vshrl.u32 %v901, 7
    %v903 = vsub.s32 %v900, %v902
    %v904 = vrot.slane %v896, %v903
    %v906 = vunpack.c.l.s4 1934713408
    %v907 = vunpack.c.0.s8 %v906
    %v908 = vlaneseq
    %v909 = vshrl.u32 %v908, 7
    %v910 = vsub.s32 %v907, %v909
    %v911 = vrot.slane %v897, %v910
    %v912 = vcombine.low %v888, %v904
    %v913 = vcombine.high %v888, %v904
    %v914 = vcombine.low %v895, %v911
    %v915 = vcombine.high %v895, %v911
    %v916 = vcombine.low %v548, %v555
    %v918 = vunpack.c.l.s4 1983009808
    %v919 = vunpack.c.0.s8 %v918
    %v920 = vlaneseq
    %v921 = vshrl.u32 %v920, 7
    %v922 = vsub.s32 %v919, %v921
    %v923 = vrot.slane %v916, %v922
    %v924 = vcombine.low %v572, %v573
    %v926 = vunpack.c.l.s4 1983009808
    %v927 = vunpack.c.0.s8 %v926
    %v928 = vlaneseq
    %v929 = vshrl.u32 %v928, 7
    %v930 = vsub.s32 %v927, %v929
    %v931 = vrot.slane %v924, %v930
    %v932 = vcombine.low %v564, %v571
    %v934 = vunpack.c.l.s4 1983009808
    %v935 = vunpack.c.0.s8 %v934
    %v936 = vlaneseq
    %v937 = vshrl.u32 %v936, 7
    %v938 = vsub.s32 %v935, %v937
    %v939 = vrot.slane %v932, %v938
    %v940 = vcombine.low %v574, %v575
    %v942 = vunpack.c.l.s4 1983009808
    %v943 = vunpack.c.0.s8 %v942
    %v944 = vlaneseq
    %v945 = vshrl.u32 %v944, 7
    %v946 = vsub.s32 %v943, %v945
    %v947 = vrot.slane %v940, %v946
    %v948 = vcombine.low %v923, %v931
    %v949 = vcombine.high %v923, %v931
    %v951 = vunpack.c.l.s4 1934713408
    %v952 = vunpack.c.0.s8 %v951
    %v953 = vlaneseq
    %v954 = vshrl.u32 %v953, 7
    %v955 = vsub.s32 %v952, %v954
    %v956 = vrot.slane %v948, %v955
    %v958 = vunpack.c.l.s4 1934713408
    %v959 = vunpack.c.0.s8 %v958
    %v960 = vlaneseq
    %v961 = vshrl.u32 %v960, 7
    %v962 = vsub.s32 %v959, %v961
    %v963 = vrot.slane %v949, %v962
    %v964 = vcombine.low %v939, %v947
    %v965 = vcombine.high %v939, %v947
    %v967 = vunpack.c.l.s4 1934713408
    %v968 = vunpack.c.0.s8 %v967
    %v969 = vlaneseq
    %v970 = vshrl.u32 %v969, 7
    %v971 = vsub.s32 %v968, %v970
    %v972 = vrot.slane %v964, %v971
    %v974 = vunpack.c.l.s4 1934713408
    %v975 = vunpack.c.0.s8 %v974
    %v976 = vlaneseq
    %v977 = vshrl.u32 %v976, 7
    %v978 = vsub.s32 %v975, %v977
    %v979 = vrot.slane %v965, %v978
    %v980 = vcombine.low %v956, %v972
    %v981 = vcombine.high %v956, %v972
    %v982 = vcombine.low %v963, %v979
    %v983 = vcombine.high %v963, %v979
    %v984 = vcombine.low %v616, %v623
    %v986 = vunpack.c.l.s4 1983009808
    %v987 = vunpack.c.0.s8 %v986
    %v988 = vlaneseq
    %v989 = vshrl.u32 %v988, 7
    %v990 = vsub.s32 %v987, %v989
    %v991 = vrot.slane %v984, %v990
    %v992 = vcombine.low %v640, %v641
    %v994 = vunpack.c.l.s4 1983009808
    %v995 = vunpack.c.0.s8 %v994
    %v996 = vlaneseq
    %v997 = vshrl.u32 %v996, 7
    %v998 = vsub.s32 %v995, %v997
    %v999 = vrot.slane %v992, %v998
    %v1000 = vcombine.low %v632, %v639
    %v1002 = vunpack.c.l.s4 1983009808
    %v1003 = vunpack.c.0.s8 %v1002
    %v1004 = vlaneseq
    %v1005 = vshrl.u32 %v1004, 7
    %v1006 = vsub.s32 %v1003, %v1005
    %v1007 = vrot.slane %v1000, %v1006
    %v1008 = vcombine.low %v642, %v643
    %v1010 = vunpack.c.l.s4 1983009808
    %v1011 = vunpack.c.0.s8 %v1010
    %v1012 = vlaneseq
    %v1013 = vshrl.u32 %v1012, 7
    %v1014 = vsub.s32 %v1011, %v1013
    %v1015 = vrot.slane %v1008, %v1014
    %v1016 = vcombine.low %v991, %v999
    %v1017 = vcombine.high %v991, %v999
    %v1019 = vunpack.c.l.s4 1934713408
    %v1020 = vunpack.c.0.s8 %v1019
    %v1021 = vlaneseq
    %v1022 = vshrl.u32 %v1021, 7
    %v1023 = vsub.s32 %v1020, %v1022
    %v1024 = vrot.slane %v1016, %v1023
    %v1026 = vunpack.c.l.s4 1934713408
    %v1027 = vunpack.c.0.s8 %v1026
    %v1028 = vlaneseq
    %v1029 = vshrl.u32 %v1028, 7
    %v1030 = vsub.s32 %v1027, %v1029
    %v1031 = vrot.slane %v1017, %v1030
    %v1032 = vcombine.low %v1007, %v1015
    %v1033 = vcombine.high %v1007, %v1015
    %v1035 = vunpack.c.l.s4 1934713408
    %v1036 = vunpack.c.0.s8 %v1035
    %v1037 = vlaneseq
    %v1038 = vshrl.u32 %v1037, 7
    %v1039 = vsub.s32 %v1036, %v1038
    %v1040 = vrot.slane %v1032, %v1039
    %v1042 = vunpack.c.l.s4 1934713408
    %v1043 = vunpack.c.0.s8 %v1042
    %v1044 = vlaneseq
    %v1045 = vshrl.u32 %v1044, 7
    %v1046 = vsub.s32 %v1043, %v1045
    %v1047 = vrot.slane %v1033, %v1046
    %v1048 = vcombine.low %v1024, %v1040
    %v1049 = vcombine.high %v1024, %v1040
    %v1050 = vcombine.low %v1031, %v1047
    %v1051 = vcombine.high %v1031, %v1047
    %v1052 = vcombine.low %v684, %v691
    %v1054 = vunpack.c.l.s4 1983009808
    %v1055 = vunpack.c.0.s8 %v1054
    %v1056 = vlaneseq
    %v1057 = vshrl.u32 %v1056, 7
    %v1058 = vsub.s32 %v1055, %v1057
    %v1059 = vrot.slane %v1052, %v1058
    %v1060 = vcombine.low %v708, %v709
    %v1062 = vunpack.c.l.s4 1983009808
    %v1063 = vunpack.c.0.s8 %v1062
    %v1064 = vlaneseq
    %v1065 = vshrl.u32 %v1064, 7
    %v1066 = vsub.s32 %v1063, %v1065
    %v1067 = vrot.slane %v1060, %v1066
    %v1068 = vcombine.low %v700, %v707
    %v1070 = vunpack.c.l.s4 1983009808
    %v1071 = vunpack.c.0.s8 %v1070
    %v1072 = vlaneseq
    %v1073 = vshrl.u32 %v1072, 7
    %v1074 = vsub.s32 %v1071, %v1073
    %v1075 = vrot.slane %v1068, %v1074
    %v1076 = vcombine.low %v710, %v711
    %v1078 = vunpack.c.l.s4 1983009808
    %v1079 = vunpack.c.0.s8 %v1078
    %v1080 = vlaneseq
    %v1081 = vshrl.u32 %v1080, 7
    %v1082 = vsub.s32 %v1079, %v1081
    %v1083 = vrot.slane %v1076, %v1082
    %v1084 = vcombine.low %v1059, %v1067
    %v1085 = vcombine.high %v1059, %v1067
    %v1087 = vunpack.c.l.s4 1934713408
    %v1088 = vunpack.c.0.s8 %v1087
    %v1089 = vlaneseq
    %v1090 = vshrl.u32 %v1089, 7
    %v1091 = vsub.s32 %v1088, %v1090
    %v1092 = vrot.slane %v1084, %v1091
    %v1094 = vunpack.c.l.s4 1934713408
    %v1095 = vunpack.c.0.s8 %v1094
    %v1096 = vlaneseq
    %v1097 = vshrl.u32 %v1096, 7
    %v1098 = vsub.s32 %v1095, %v1097
    %v1099 = vrot.slane %v1085, %v1098
    %v1100 = vcombine.low %v1075, %v1083
    %v1101 = vcombine.high %v1075, %v1083
    %v1103 = vunpack.c.l.s4 1934713408
    %v1104 = vunpack.c.0.s8 %v1103
    %v1105 = vlaneseq
    %v1106 = vshrl.u32 %v1105, 7
    %v1107 = vsub.s32 %v1104, %v1106
    %v1108 = vrot.slane %v1100, %v1107
    %v1110 = vunpack.c.l.s4 1934713408
    %v1111 = vunpack.c.0.s8 %v1110
    %v1112 = vlaneseq
    %v1113 = vshrl.u32 %v1112, 7
    %v1114 = vsub.s32 %v1111, %v1113
    %v1115 = vrot.slane %v1101, %v1114
    %v1116 = vcombine.low %v1092, %v1108
    %v1117 = vcombine.high %v1092, %v1108
    %v1118 = vcombine.low %v1099, %v1115
    %v1119 = vcombine.high %v1099, %v1115
    %v1120 = vcombine.low %v752, %v759
    %v1122 = vunpack.c.l.s4 1983009808
    %v1123 = vunpack.c.0.s8 %v1122
    %v1124 = vlaneseq
    %v1125 = vshrl.u32 %v1124, 7
    %v1126 = vsub.s32 %v1123, %v1125
    %v1127 = vrot.slane %v1120, %v1126
    %v1128 = vcombine.low %v776, %v777
    %v1130 = vunpack.c.l.s4 1983009808
    %v1131 = vunpack.c.0.s8 %v1130
    %v1132 = vlaneseq
    %v1133 = vshrl.u32 %v1132, 7
    %v1134 = vsub.s32 %v1131, %v1133
    %v1135 = vrot.slane %v1128, %v1134
    %v1136 = vcombine.low %v768, %v775
    %v1138 = vunpack.c.l.s4 1983009808
    %v1139 = vunpack.c.0.s8 %v1138
    %v1140 = vlaneseq
    %v1141 = vshrl.u32 %v1140, 7
    %v1142 = vsub.s32 %v1139, %v1141
    %v1143 = vrot.slane %v1136, %v1142
    %v1144 = vcombine.low %v778, %v779
    %v1146 = vunpack.c.l.s4 1983009808
    %v1147 = vunpack.c.0.s8 %v1146
    %v1148 = vlaneseq
    %v1149 = vshrl.u32 %v1148, 7
    %v1150 = vsub.s32 %v1147, %v1149
    %v1151 = vrot.slane %v1144, %v1150
    %v1152 = vcombine.low %v1127, %v1135
    %v1153 = vcombine.high %v1127, %v1135
    %v1155 = vunpack.c.l.s4 1934713408
    %v1156 = vunpack.c.0.s8 %v1155
    %v1157 = vlaneseq
    %v1158 = vshrl.u32 %v1157, 7
    %v1159 = vsub.s32 %v1156, %v1158
    %v1160 = vrot.slane %v1152, %v1159
    %v1162 = vunpack.c.l.s4 1934713408
    %v1163 = vunpack.c.0.s8 %v1162
    %v1164 = vlaneseq
    %v1165 = vshrl.u32 %v1164, 7
    %v1166 = vsub.s32 %v1163, %v1165
    %v1167 = vrot.slane %v1153, %v1166
    %v1168 = vcombine.low %v1143, %v1151
    %v1169 = vcombine.high %v1143, %v1151
    %v1171 = vunpack.c.l.s4 1934713408
    %v1172 = vunpack.c.0.s8 %v1171
    %v1173 = vlaneseq
    %v1174 = vshrl.u32 %v1173, 7
    %v1175 = vsub.s32 %v1172, %v1174
    %v1176 = vrot.slane %v1168, %v1175
    %v1178 = vunpack.c.l.s4 1934713408
    %v1179 = vunpack.c.0.s8 %v1178
    %v1180 = vlaneseq
    %v1181 = vshrl.u32 %v1180, 7
    %v1182 = vsub.s32 %v1179, %v1181
    %v1183 = vrot.slane %v1169, %v1182
    %v1184 = vcombine.low %v1160, %v1176
    %v1185 = vcombine.high %v1160, %v1176
    %v1186 = vcombine.low %v1167, %v1183
    %v1187 = vcombine.high %v1167, %v1183
    %vm1188 = vcmask 64512
    %v1190 = vsel %vm1188, %v844, 0
    %v1193 = vsel %vm1188, %v980, 0
    %1195 = vmatprep.subr.mxu0 0.0
    %1196 = vmatpush1.xpose.msra.mxu0 %v1193
    %1197 = vmatprep.subr.mxu0 0.0
    %1198 = vmatpush1.xpose.msra.mxu0 0.0
    %1199 = vmatprep.subr.mxu0 0.0
    %1200 = vmatpush1.xpose.msra.mxu0 0.0
    %1201 = vmatprep.subr.mxu0 0.0
    %1202 = vmatpush1.xpose.msra.mxu0 0.0
    %1203 = vmatprep.subr.mxu0 0.0
    %1204 = vmatpush1.xpose.msra.mxu0 0.0
    %1205 = vmatprep.subr.mxu0 0.0
    %1206 = vmatpush1.xpose.msra.mxu0 0.0
    %1207 = vmatprep.subr.mxu0 0.0
    %1208 = vmatpush1.xpose.msra.mxu0 0.0
    %1209 = vmatprep.subr.mxu0 0.0
    %1210 = vmatpush1.xpose.msra.mxu0 0.0
    %1211 = vmatprep.subr.mxu0 0.0
    %1212 = vmatpush1.xpose.msra.mxu0 0.0
    %1213 = vmatprep.subr.mxu0 0.0
    %1214 = vmatpush1.xpose.msra.mxu0 0.0
    %1215 = vmatprep.subr.mxu0 0.0
    %1216 = vmatpush1.xpose.msra.mxu0 0.0
    %1217 = vmatprep.subr.mxu0 0.0
    %1218 = vmatpush1.xpose.msra.mxu0 0.0
    %1219 = vmatprep.subr.mxu0 0.0
    %1220 = vmatpush1.xpose.msra.mxu0 0.0
    %1221 = vmatprep.subr.mxu0 0.0
    %1222 = vmatpush1.xpose.msra.mxu0 0.0
    %1223 = vmatprep.subr.mxu0 0.0
    %1224 = vmatpush1.xpose.msra.mxu0 0.0
    %1225 = vmatprep.subr.mxu0 0.0
    %1226 = vmatpush1.xpose.msra.mxu0 0.0
    %1227 = vmatprep.subr.mxu0 0.0
    %1228 = vmatpush1.xpose.msra.mxu0 0.0
    %1229 = vmatprep.subr.mxu0 0.0
    %1230 = vmatpush1.xpose.msra.mxu0 0.0
    %1231 = vmatprep.subr.mxu0 0.0
    %1232 = vmatpush1.xpose.msra.mxu0 0.0
    %1233 = vmatprep.subr.mxu0 0.0
    %1234 = vmatpush1.xpose.msra.mxu0 0.0
    %1235 = vmatprep.subr.mxu0 0.0
    %1236 = vmatpush1.xpose.msra.mxu0 0.0
    %1237 = vmatprep.subr.mxu0 0.0
    %1238 = vmatpush1.xpose.msra.mxu0 0.0
    %1239 = vmatprep.subr.mxu0 0.0
    %1240 = vmatpush1.xpose.msra.mxu0 0.0
    %1241 = vmatprep.subr.mxu0 0.0
    %1242 = vmatpush1.xpose.msra.mxu0 0.0
    %1243 = vmatprep.subr.mxu0 0.0
    %1244 = vmatpush1.xpose.msra.mxu0 0.0
    %1245 = vmatprep.subr.mxu0 0.0
    %1246 = vmatpush1.xpose.msra.mxu0 0.0
    %1247 = vmatprep.subr.mxu0 0.0
    %1248 = vmatpush1.xpose.msra.mxu0 0.0
    %1249 = vmatprep.subr.mxu0 0.0
    %1250 = vmatpush1.xpose.msra.mxu0 0.0
    %1251 = vmatprep.subr.mxu0 0.0
    %1252 = vmatpush1.xpose.msra.mxu0 0.0
    %1253 = vmatprep.subr.mxu0 0.0
    %1254 = vmatpush1.xpose.msra.mxu0 0.0
    %1255 = vmatprep.subr.mxu0 0.0
    %1256 = vmatpush1.xpose.msra.mxu0 0.0
    %1257 = vmatprep.subr.mxu0 0.0
    %1258 = vmatpush1.xpose.msra.mxu0 0.0
    %1259 = vmatprep.mubr.f32.mxu0 0.0
    %1260 = vmatmul.mubr.f32.gmra.mrb[0].mxu0 %v1190
    %v1261 = vpop.f32.mrb[0].mxu0
    %v1262 = vadd.f32 0.0, %v1261
    %v1263 = vpop.f32.mrb[0].mxu0
    %1264 = vdwg.mxu0
    %v1266 = vsel %vm1188, %v845, 0
    %v1269 = vsel %vm1188, %v981, 0
    %1271 = vmatprep.subr.mxu0 0.0
    %1272 = vmatpush1.xpose.msra.mxu0 %v1269
    %1273 = vmatprep.subr.mxu0 0.0
    %1274 = vmatpush1.xpose.msra.mxu0 0.0
    %1275 = vmatprep.subr.mxu0 0.0
    %1276 = vmatpush1.xpose.msra.mxu0 0.0
    %1277 = vmatprep.subr.mxu0 0.0
    %1278 = vmatpush1.xpose.msra.mxu0 0.0
    %1279 = vmatprep.subr.mxu0 0.0
    %1280 = vmatpush1.xpose.msra.mxu0 0.0
    %1281 = vmatprep.subr.mxu0 0.0
    %1282 = vmatpush1.xpose.msra.mxu0 0.0
    %1283 = vmatprep.subr.mxu0 0.0
    %1284 = vmatpush1.xpose.msra.mxu0 0.0
    %1285 = vmatprep.subr.mxu0 0.0
    %1286 = vmatpush1.xpose.msra.mxu0 0.0
    %1287 = vmatprep.subr.mxu0 0.0
    %1288 = vmatpush1.xpose.msra.mxu0 0.0
    %1289 = vmatprep.subr.mxu0 0.0
    %1290 = vmatpush1.xpose.msra.mxu0 0.0
    %1291 = vmatprep.subr.mxu0 0.0
    %1292 = vmatpush1.xpose.msra.mxu0 0.0
    %1293 = vmatprep.subr.mxu0 0.0
    %1294 = vmatpush1.xpose.msra.mxu0 0.0
    %1295 = vmatprep.subr.mxu0 0.0
    %1296 = vmatpush1.xpose.msra.mxu0 0.0
    %1297 = vmatprep.subr.mxu0 0.0
    %1298 = vmatpush1.xpose.msra.mxu0 0.0
    %1299 = vmatprep.subr.mxu0 0.0
    %1300 = vmatpush1.xpose.msra.mxu0 0.0
    %1301 = vmatprep.subr.mxu0 0.0
    %1302 = vmatpush1.xpose.msra.mxu0 0.0
    %1303 = vmatprep.subr.mxu0 0.0
    %1304 = vmatpush1.xpose.msra.mxu0 0.0
    %1305 = vmatprep.subr.mxu0 0.0
    %1306 = vmatpush1.xpose.msra.mxu0 0.0
    %1307 = vmatprep.subr.mxu0 0.0
    %1308 = vmatpush1.xpose.msra.mxu0 0.0
    %1309 = vmatprep.subr.mxu0 0.0
    %1310 = vmatpush1.xpose.msra.mxu0 0.0
    %1311 = vmatprep.subr.mxu0 0.0
    %1312 = vmatpush1.xpose.msra.mxu0 0.0
    %1313 = vmatprep.subr.mxu0 0.0
    %1314 = vmatpush1.xpose.msra.mxu0 0.0
    %1315 = vmatprep.subr.mxu0 0.0
    %1316 = vmatpush1.xpose.msra.mxu0 0.0
    %1317 = vmatprep.subr.mxu0 0.0
    %1318 = vmatpush1.xpose.msra.mxu0 0.0
    %1319 = vmatprep.subr.mxu0 0.0
    %1320 = vmatpush1.xpose.msra.mxu0 0.0
    %1321 = vmatprep.subr.mxu0 0.0
    %1322 = vmatpush1.xpose.msra.mxu0 0.0
    %1323 = vmatprep.subr.mxu0 0.0
    %1324 = vmatpush1.xpose.msra.mxu0 0.0
    %1325 = vmatprep.subr.mxu0 0.0
    %1326 = vmatpush1.xpose.msra.mxu0 0.0
    %1327 = vmatprep.subr.mxu0 0.0
    %1328 = vmatpush1.xpose.msra.mxu0 0.0
    %1329 = vmatprep.subr.mxu0 0.0
    %1330 = vmatpush1.xpose.msra.mxu0 0.0
    %1331 = vmatprep.subr.mxu0 0.0
    %1332 = vmatpush1.xpose.msra.mxu0 0.0
    %1333 = vmatprep.subr.mxu0 0.0
    %1334 = vmatpush1.xpose.msra.mxu0 0.0
    %1335 = vmatprep.mubr.f32.mxu0 0.0
    %1336 = vmatmul.mubr.f32.gmra.mrb[0].mxu0 %v1266
    %v1337 = vpop.f32.mrb[0].mxu0
    %v1338 = vadd.f32 0.0, %v1337
    %v1339 = vpop.f32.mrb[0].mxu0
    %1340 = vdwg.mxu0
    %v1342 = vsel %vm1188, %v846, 0
    %v1345 = vsel %vm1188, %v982, 0
    %1347 = vmatprep.subr.mxu0 0.0
    %1348 = vmatpush1.xpose.msra.mxu0 %v1345
    %1349 = vmatprep.subr.mxu0 0.0
    %1350 = vmatpush1.xpose.msra.mxu0 0.0
    %1351 = vmatprep.subr.mxu0 0.0
    %1352 = vmatpush1.xpose.msra.mxu0 0.0
    %1353 = vmatprep.subr.mxu0 0.0
    %1354 = vmatpush1.xpose.msra.mxu0 0.0
    %1355 = vmatprep.subr.mxu0 0.0
    %1356 = vmatpush1.xpose.msra.mxu0 0.0
    %1357 = vmatprep.subr.mxu0 0.0
    %1358 = vmatpush1.xpose.msra.mxu0 0.0
    %1359 = vmatprep.subr.mxu0 0.0
    %1360 = vmatpush1.xpose.msra.mxu0 0.0
    %1361 = vmatprep.subr.mxu0 0.0
    %1362 = vmatpush1.xpose.msra.mxu0 0.0
    %1363 = vmatprep.subr.mxu0 0.0
    %1364 = vmatpush1.xpose.msra.mxu0 0.0
    %1365 = vmatprep.subr.mxu0 0.0
    %1366 = vmatpush1.xpose.msra.mxu0 0.0
    %1367 = vmatprep.subr.mxu0 0.0
    %1368 = vmatpush1.xpose.msra.mxu0 0.0
    %1369 = vmatprep.subr.mxu0 0.0
    %1370 = vmatpush1.xpose.msra.mxu0 0.0
    %1371 = vmatprep.subr.mxu0 0.0
    %1372 = vmatpush1.xpose.msra.mxu0 0.0
    %1373 = vmatprep.subr.mxu0 0.0
    %1374 = vmatpush1.xpose.msra.mxu0 0.0
    %1375 = vmatprep.subr.mxu0 0.0
    %1376 = vmatpush1.xpose.msra.mxu0 0.0
    %1377 = vmatprep.subr.mxu0 0.0
    %1378 = vmatpush1.xpose.msra.mxu0 0.0
    %1379 = vmatprep.subr.mxu0 0.0
    %1380 = vmatpush1.xpose.msra.mxu0 0.0
    %1381 = vmatprep.subr.mxu0 0.0
    %1382 = vmatpush1.xpose.msra.mxu0 0.0
    %1383 = vmatprep.subr.mxu0 0.0
    %1384 = vmatpush1.xpose.msra.mxu0 0.0
    %1385 = vmatprep.subr.mxu0 0.0
    %1386 = vmatpush1.xpose.msra.mxu0 0.0
    %1387 = vmatprep.subr.mxu0 0.0
    %1388 = vmatpush1.xpose.msra.mxu0 0.0
    %1389 = vmatprep.subr.mxu0 0.0
    %1390 = vmatpush1.xpose.msra.mxu0 0.0
    %1391 = vmatprep.subr.mxu0 0.0
    %1392 = vmatpush1.xpose.msra.mxu0 0.0
    %1393 = vmatprep.subr.mxu0 0.0
    %1394 = vmatpush1.xpose.msra.mxu0 0.0
    %1395 = vmatprep.subr.mxu0 0.0
    %1396 = vmatpush1.xpose.msra.mxu0 0.0
    %1397 = vmatprep.subr.mxu0 0.0
    %1398 = vmatpush1.xpose.msra.mxu0 0.0
    %1399 = vmatprep.subr.mxu0 0.0
    %1400 = vmatpush1.xpose.msra.mxu0 0.0
    %1401 = vmatprep.subr.mxu0 0.0
    %1402 = vmatpush1.xpose.msra.mxu0 0.0
    %1403 = vmatprep.subr.mxu0 0.0
    %1404 = vmatpush1.xpose.msra.mxu0 0.0
    %1405 = vmatprep.subr.mxu0 0.0
    %1406 = vmatpush1.xpose.msra.mxu0 0.0
    %1407 = vmatprep.subr.mxu0 0.0
    %1408 = vmatpush1.xpose.msra.mxu0 0.0
    %1409 = vmatprep.subr.mxu0 0.0
    %1410 = vmatpush1.xpose.msra.mxu0 0.0
    %1411 = vmatprep.mubr.f32.mxu0 0.0
    %1412 = vmatmul.mubr.f32.gmra.mrb[0].mxu0 %v1342
    %v1413 = vpop.f32.mrb[0].mxu0
    %v1414 = vadd.f32 0.0, %v1413
    %v1415 = vpop.f32.mrb[0].mxu0
    %1416 = vdwg.mxu0
    %v1418 = vsel %vm1188, %v847, 0
    %v1421 = vsel %vm1188, %v983, 0
    %1423 = vmatprep.subr.mxu0 0.0
    %1424 = vmatpush1.xpose.msra.mxu0 %v1421
    %1425 = vmatprep.subr.mxu0 0.0
    %1426 = vmatpush1.xpose.msra.mxu0 0.0
    %1427 = vmatprep.subr.mxu0 0.0
    %1428 = vmatpush1.xpose.msra.mxu0 0.0
    %1429 = vmatprep.subr.mxu0 0.0
    %1430 = vmatpush1.xpose.msra.mxu0 0.0
    %1431 = vmatprep.subr.mxu0 0.0
    %1432 = vmatpush1.xpose.msra.mxu0 0.0
    %1433 = vmatprep.subr.mxu0 0.0
    %1434 = vmatpush1.xpose.msra.mxu0 0.0
    %1435 = vmatprep.subr.mxu0 0.0
    %1436 = vmatpush1.xpose.msra.mxu0 0.0
    %1437 = vmatprep.subr.mxu0 0.0
    %1438 = vmatpush1.xpose.msra.mxu0 0.0
    %1439 = vmatprep.subr.mxu0 0.0
    %1440 = vmatpush1.xpose.msra.mxu0 0.0
    %1441 = vmatprep.subr.mxu0 0.0
    %1442 = vmatpush1.xpose.msra.mxu0 0.0
    %1443 = vmatprep.subr.mxu0 0.0
    %1444 = vmatpush1.xpose.msra.mxu0 0.0
    %1445 = vmatprep.subr.mxu0 0.0
    %1446 = vmatpush1.xpose.msra.mxu0 0.0
    %1447 = vmatprep.subr.mxu0 0.0
    %1448 = vmatpush1.xpose.msra.mxu0 0.0
    %1449 = vmatprep.subr.mxu0 0.0
    %1450 = vmatpush1.xpose.msra.mxu0 0.0
    %1451 = vmatprep.subr.mxu0 0.0
    %1452 = vmatpush1.xpose.msra.mxu0 0.0
    %1453 = vmatprep.subr.mxu0 0.0
    %1454 = vmatpush1.xpose.msra.mxu0 0.0
    %1455 = vmatprep.subr.mxu0 0.0
    %1456 = vmatpush1.xpose.msra.mxu0 0.0
    %1457 = vmatprep.subr.mxu0 0.0
    %1458 = vmatpush1.xpose.msra.mxu0 0.0
    %1459 = vmatprep.subr.mxu0 0.0
    %1460 = vmatpush1.xpose.msra.mxu0 0.0
    %1461 = vmatprep.subr.mxu0 0.0
    %1462 = vmatpush1.xpose.msra.mxu0 0.0
    %1463 = vmatprep.subr.mxu0 0.0
    %1464 = vmatpush1.xpose.msra.mxu0 0.0
    %1465 = vmatprep.subr.mxu0 0.0
    %1466 = vmatpush1.xpose.msra.mxu0 0.0
    %1467 = vmatprep.subr.mxu0 0.0
    %1468 = vmatpush1.xpose.msra.mxu0 0.0
    %1469 = vmatprep.subr.mxu0 0.0
    %1470 = vmatpush1.xpose.msra.mxu0 0.0
    %1471 = vmatprep.subr.mxu0 0.0
    %1472 = vmatpush1.xpose.msra.mxu0 0.0
    %1473 = vmatprep.subr.mxu0 0.0
    %1474 = vmatpush1.xpose.msra.mxu0 0.0
    %1475 = vmatprep.subr.mxu0 0.0
    %1476 = vmatpush1.xpose.msra.mxu0 0.0
    %1477 = vmatprep.subr.mxu0 0.0
    %1478 = vmatpush1.xpose.msra.mxu0 0.0
    %1479 = vmatprep.subr.mxu0 0.0
    %1480 = vmatpush1.xpose.msra.mxu0 0.0
    %1481 = vmatprep.subr.mxu0 0.0
    %1482 = vmatpush1.xpose.msra.mxu0 0.0
    %1483 = vmatprep.subr.mxu0 0.0
    %1484 = vmatpush1.xpose.msra.mxu0 0.0
    %1485 = vmatprep.subr.mxu0 0.0
    %1486 = vmatpush1.xpose.msra.mxu0 0.0
    %1487 = vmatprep.mubr.f32.mxu0 0.0
    %1488 = vmatmul.mubr.f32.gmra.mrb[0].mxu0 %v1418
    %v1489 = vpop.f32.mrb[0].mxu0
    %v1490 = vadd.f32 0.0, %v1489
    %v1491 = vpop.f32.mrb[0].mxu0
    %1492 = vdwg.mxu0
    %v1494 = vsel %vm1188, %v912, 0
    %v1497 = vsel %vm1188, %v1048, 0
    %1499 = vmatprep.subr.mxu0 0.0
    %1500 = vmatpush1.xpose.msra.mxu0 %v1497
    %1501 = vmatprep.subr.mxu0 0.0
    %1502 = vmatpush1.xpose.msra.mxu0 0.0
    %1503 = vmatprep.subr.mxu0 0.0
    %1504 = vmatpush1.xpose.msra.mxu0 0.0
    %1505 = vmatprep.subr.mxu0 0.0
    %1506 = vmatpush1.xpose.msra.mxu0 0.0
    %1507 = vmatprep.subr.mxu0 0.0
    %1508 = vmatpush1.xpose.msra.mxu0 0.0
    %1509 = vmatprep.subr.mxu0 0.0
    %1510 = vmatpush1.xpose.msra.mxu0 0.0
    %1511 = vmatprep.subr.mxu0 0.0
    %1512 = vmatpush1.xpose.msra.mxu0 0.0
    %1513 = vmatprep.subr.mxu0 0.0
    %1514 = vmatpush1.xpose.msra.mxu0 0.0
    %1515 = vmatprep.subr.mxu0 0.0
    %1516 = vmatpush1.xpose.msra.mxu0 0.0
    %1517 = vmatprep.subr.mxu0 0.0
    %1518 = vmatpush1.xpose.msra.mxu0 0.0
    %1519 = vmatprep.subr.mxu0 0.0
    %1520 = vmatpush1.xpose.msra.mxu0 0.0
    %1521 = vmatprep.subr.mxu0 0.0
    %1522 = vmatpush1.xpose.msra.mxu0 0.0
    %1523 = vmatprep.subr.mxu0 0.0
    %1524 = vmatpush1.xpose.msra.mxu0 0.0
    %1525 = vmatprep.subr.mxu0 0.0
    %1526 = vmatpush1.xpose.msra.mxu0 0.0
    %1527 = vmatprep.subr.mxu0 0.0
    %1528 = vmatpush1.xpose.msra.mxu0 0.0
    %1529 = vmatprep.subr.mxu0 0.0
    %1530 = vmatpush1.xpose.msra.mxu0 0.0
    %1531 = vmatprep.subr.mxu0 0.0
    %1532 = vmatpush1.xpose.msra.mxu0 0.0
    %1533 = vmatprep.subr.mxu0 0.0
    %1534 = vmatpush1.xpose.msra.mxu0 0.0
    %1535 = vmatprep.subr.mxu0 0.0
    %1536 = vmatpush1.xpose.msra.mxu0 0.0
    %1537 = vmatprep.subr.mxu0 0.0
    %1538 = vmatpush1.xpose.msra.mxu0 0.0
    %1539 = vmatprep.subr.mxu0 0.0
    %1540 = vmatpush1.xpose.msra.mxu0 0.0
    %1541 = vmatprep.subr.mxu0 0.0
    %1542 = vmatpush1.xpose.msra.mxu0 0.0
    %1543 = vmatprep.subr.mxu0 0.0
    %1544 = vmatpush1.xpose.msra.mxu0 0.0
    %1545 = vmatprep.subr.mxu0 0.0
    %1546 = vmatpush1.xpose.msra.mxu0 0.0
    %1547 = vmatprep.subr.mxu0 0.0
    %1548 = vmatpush1.xpose.msra.mxu0 0.0
    %1549 = vmatprep.subr.mxu0 0.0
    %1550 = vmatpush1.xpose.msra.mxu0 0.0
    %1551 = vmatprep.subr.mxu0 0.0
    %1552 = vmatpush1.xpose.msra.mxu0 0.0
    %1553 = vmatprep.subr.mxu0 0.0
    %1554 = vmatpush1.xpose.msra.mxu0 0.0
    %1555 = vmatprep.subr.mxu0 0.0
    %1556 = vmatpush1.xpose.msra.mxu0 0.0
    %1557 = vmatprep.subr.mxu0 0.0
    %1558 = vmatpush1.xpose.msra.mxu0 0.0
    %1559 = vmatprep.subr.mxu0 0.0
    %1560 = vmatpush1.xpose.msra.mxu0 0.0
    %1561 = vmatprep.subr.mxu0 0.0
    %1562 = vmatpush1.xpose.msra.mxu0 0.0
    %1563 = vmatprep.mubr.f32.mxu0 0.0
    %1564 = vmatmul.mubr.f32.gmra.mrb[0].mxu0 %v1494
    %v1565 = vpop.f32.mrb[0].mxu0
    %v1566 = vadd.f32 0.0, %v1565
    %v1567 = vpop.f32.mrb[0].mxu0
    %1568 = vdwg.mxu0
    %v1570 = vsel %vm1188, %v913, 0
    %v1573 = vsel %vm1188, %v1049, 0
    %1575 = vmatprep.subr.mxu0 0.0
    %1576 = vmatpush1.xpose.msra.mxu0 %v1573
    %1577 = vmatprep.subr.mxu0 0.0
    %1578 = vmatpush1.xpose.msra.mxu0 0.0
    %1579 = vmatprep.subr.mxu0 0.0
    %1580 = vmatpush1.xpose.msra.mxu0 0.0
    %1581 = vmatprep.subr.mxu0 0.0
    %1582 = vmatpush1.xpose.msra.mxu0 0.0
    %1583 = vmatprep.subr.mxu0 0.0
    %1584 = vmatpush1.xpose.msra.mxu0 0.0
    %1585 = vmatprep.subr.mxu0 0.0
    %1586 = vmatpush1.xpose.msra.mxu0 0.0
    %1587 = vmatprep.subr.mxu0 0.0
    %1588 = vmatpush1.xpose.msra.mxu0 0.0
    %1589 = vmatprep.subr.mxu0 0.0
    %1590 = vmatpush1.xpose.msra.mxu0 0.0
    %1591 = vmatprep.subr.mxu0 0.0
    %1592 = vmatpush1.xpose.msra.mxu0 0.0
    %1593 = vmatprep.subr.mxu0 0.0
    %1594 = vmatpush1.xpose.msra.mxu0 0.0
    %1595 = vmatprep.subr.mxu0 0.0
    %1596 = vmatpush1.xpose.msra.mxu0 0.0
    %1597 = vmatprep.subr.mxu0 0.0
    %1598 = vmatpush1.xpose.msra.mxu0 0.0
    %1599 = vmatprep.subr.mxu0 0.0
    %1600 = vmatpush1.xpose.msra.mxu0 0.0
    %1601 = vmatprep.subr.mxu0 0.0
    %1602 = vmatpush1.xpose.msra.mxu0 0.0
    %1603 = vmatprep.subr.mxu0 0.0
    %1604 = vmatpush1.xpose.msra.mxu0 0.0
    %1605 = vmatprep.subr.mxu0 0.0
    %1606 = vmatpush1.xpose.msra.mxu0 0.0
    %1607 = vmatprep.subr.mxu0 0.0
    %1608 = vmatpush1.xpose.msra.mxu0 0.0
    %1609 = vmatprep.subr.mxu0 0.0
    %1610 = vmatpush1.xpose.msra.mxu0 0.0
    %1611 = vmatprep.subr.mxu0 0.0
    %1612 = vmatpush1.xpose.msra.mxu0 0.0
    %1613 = vmatprep.subr.mxu0 0.0
    %1614 = vmatpush1.xpose.msra.mxu0 0.0
    %1615 = vmatprep.subr.mxu0 0.0
    %1616 = vmatpush1.xpose.msra.mxu0 0.0
    %1617 = vmatprep.subr.mxu0 0.0
    %1618 = vmatpush1.xpose.msra.mxu0 0.0
    %1619 = vmatprep.subr.mxu0 0.0
    %1620 = vmatpush1.xpose.msra.mxu0 0.0
    %1621 = vmatprep.subr.mxu0 0.0
    %1622 = vmatpush1.xpose.msra.mxu0 0.0
    %1623 = vmatprep.subr.mxu0 0.0
    %1624 = vmatpush1.xpose.msra.mxu0 0.0
    %1625 = vmatprep.subr.mxu0 0.0
    %1626 = vmatpush1.xpose.msra.mxu0 0.0
    %1627 = vmatprep.subr.mxu0 0.0
    %1628 = vmatpush1.xpose.msra.mxu0 0.0
    %1629 = vmatprep.subr.mxu0 0.0
    %1630 = vmatpush1.xpose.msra.mxu0 0.0
    %1631 = vmatprep.subr.mxu0 0.0
    %1632 = vmatpush1.xpose.msra.mxu0 0.0
    %1633 = vmatprep.subr.mxu0 0.0
    %1634 = vmatpush1.xpose.msra.mxu0 0.0
    %1635 = vmatprep.subr.mxu0 0.0
    %1636 = vmatpush1.xpose.msra.mxu0 0.0
    %1637 = vmatprep.subr.mxu0 0.0
    %1638 = vmatpush1.xpose.msra.mxu0 0.0
    %1639 = vmatprep.mubr.f32.mxu0 0.0
    %1640 = vmatmul.mubr.f32.gmra.mrb[0].mxu0 %v1570
    %v1641 = vpop.f32.mrb[0].mxu0
    %v1642 = vadd.f32 0.0, %v1641
    %v1643 = vpop.f32.mrb[0].mxu0
    %1644 = vdwg.mxu0
    %v1646 = vsel %vm1188, %v914, 0
    %v1649 = vsel %vm1188, %v1050, 0
    %1651 = vmatprep.subr.mxu0 0.0
    %1652 = vmatpush1.xpose.msra.mxu0 %v1649
    %1653 = vmatprep.subr.mxu0 0.0
    %1654 = vmatpush1.xpose.msra.mxu0 0.0
    %1655 = vmatprep.subr.mxu0 0.0
    %1656 = vmatpush1.xpose.msra.mxu0 0.0
    %1657 = vmatprep.subr.mxu0 0.0
    %1658 = vmatpush1.xpose.msra.mxu0 0.0
    %1659 = vmatprep.subr.mxu0 0.0
    %1660 = vmatpush1.xpose.msra.mxu0 0.0
    %1661 = vmatprep.subr.mxu0 0.0
    %1662 = vmatpush1.xpose.msra.mxu0 0.0
    %1663 = vmatprep.subr.mxu0 0.0
    %1664 = vmatpush1.xpose.msra.mxu0 0.0
    %1665 = vmatprep.subr.mxu0 0.0
    %1666 = vmatpush1.xpose.msra.mxu0 0.0
    %1667 = vmatprep.subr.mxu0 0.0
    %1668 = vmatpush1.xpose.msra.mxu0 0.0
    %1669 = vmatprep.subr.mxu0 0.0
    %1670 = vmatpush1.xpose.msra.mxu0 0.0
    %1671 = vmatprep.subr.mxu0 0.0
    %1672 = vmatpush1.xpose.msra.mxu0 0.0
    %1673 = vmatprep.subr.mxu0 0.0
    %1674 = vmatpush1.xpose.msra.mxu0 0.0
    %1675 = vmatprep.subr.mxu0 0.0
    %1676 = vmatpush1.xpose.msra.mxu0 0.0
    %1677 = vmatprep.subr.mxu0 0.0
    %1678 = vmatpush1.xpose.msra.mxu0 0.0
    %1679 = vmatprep.subr.mxu0 0.0
    %1680 = vmatpush1.xpose.msra.mxu0 0.0
    %1681 = vmatprep.subr.mxu0 0.0
    %1682 = vmatpush1.xpose.msra.mxu0 0.0
    %1683 = vmatprep.subr.mxu0 0.0
    %1684 = vmatpush1.xpose.msra.mxu0 0.0
    %1685 = vmatprep.subr.mxu0 0.0
    %1686 = vmatpush1.xpose.msra.mxu0 0.0
    %1687 = vmatprep.subr.mxu0 0.0
    %1688 = vmatpush1.xpose.msra.mxu0 0.0
    %1689 = vmatprep.subr.mxu0 0.0
    %1690 = vmatpush1.xpose.msra.mxu0 0.0
    %1691 = vmatprep.subr.mxu0 0.0
    %1692 = vmatpush1.xpose.msra.mxu0 0.0
    %1693 = vmatprep.subr.mxu0 0.0
    %1694 = vmatpush1.xpose.msra.mxu0 0.0
    %1695 = vmatprep.subr.mxu0 0.0
    %1696 = vmatpush1.xpose.msra.mxu0 0.0
    %1697 = vmatprep.subr.mxu0 0.0
    %1698 = vmatpush1.xpose.msra.mxu0 0.0
    %1699 = vmatprep.subr.mxu0 0.0
    %1700 = vmatpush1.xpose.msra.mxu0 0.0
    %1701 = vmatprep.subr.mxu0 0.0
    %1702 = vmatpush1.xpose.msra.mxu0 0.0
    %1703 = vmatprep.subr.mxu0 0.0
    %1704 = vmatpush1.xpose.msra.mxu0 0.0
    %1705 = vmatprep.subr.mxu0 0.0
    %1706 = vmatpush1.xpose.msra.mxu0 0.0
    %1707 = vmatprep.subr.mxu0 0.0
    %1708 = vmatpush1.xpose.msra.mxu0 0.0
    %1709 = vmatprep.subr.mxu0 0.0
    %1710 = vmatpush1.xpose.msra.mxu0 0.0
    %1711 = vmatprep.subr.mxu0 0.0
    %1712 = vmatpush1.xpose.msra.mxu0 0.0
    %1713 = vmatprep.subr.mxu0 0.0
    %1714 = vmatpush1.xpose.msra.mxu0 0.0
    %1715 = vmatprep.mubr.f32.mxu0 0.0
    %1716 = vmatmul.mubr.f32.gmra.mrb[0].mxu0 %v1646
    %v1717 = vpop.f32.mrb[0].mxu0
    %v1718 = vadd.f32 0.0, %v1717
    %v1719 = vpop.f32.mrb[0].mxu0
    %1720 = vdwg.mxu0
    %v1722 = vsel %vm1188, %v915, 0
    %v1725 = vsel %vm1188, %v1051, 0
    %1727 = vmatprep.subr.mxu0 0.0
    %1728 = vmatpush1.xpose.msra.mxu0 %v1725
    %1729 = vmatprep.subr.mxu0 0.0
    %1730 = vmatpush1.xpose.msra.mxu0 0.0
    %1731 = vmatprep.subr.mxu0 0.0
    %1732 = vmatpush1.xpose.msra.mxu0 0.0
    %1733 = vmatprep.subr.mxu0 0.0
    %1734 = vmatpush1.xpose.msra.mxu0 0.0
    %1735 = vmatprep.subr.mxu0 0.0
    %1736 = vmatpush1.xpose.msra.mxu0 0.0
    %1737 = vmatprep.subr.mxu0 0.0
    %1738 = vmatpush1.xpose.msra.mxu0 0.0
    %1739 = vmatprep.subr.mxu0 0.0
    %1740 = vmatpush1.xpose.msra.mxu0 0.0
    %1741 = vmatprep.subr.mxu0 0.0
    %1742 = vmatpush1.xpose.msra.mxu0 0.0
    %1743 = vmatprep.subr.mxu0 0.0
    %1744 = vmatpush1.xpose.msra.mxu0 0.0
    %1745 = vmatprep.subr.mxu0 0.0
    %1746 = vmatpush1.xpose.msra.mxu0 0.0
    %1747 = vmatprep.subr.mxu0 0.0
    %1748 = vmatpush1.xpose.msra.mxu0 0.0
    %1749 = vmatprep.subr.mxu0 0.0
    %1750 = vmatpush1.xpose.msra.mxu0 0.0
    %1751 = vmatprep.subr.mxu0 0.0
    %1752 = vmatpush1.xpose.msra.mxu0 0.0
    %1753 = vmatprep.subr.mxu0 0.0
    %1754 = vmatpush1.xpose.msra.mxu0 0.0
    %1755 = vmatprep.subr.mxu0 0.0
    %1756 = vmatpush1.xpose.msra.mxu0 0.0
    %1757 = vmatprep.subr.mxu0 0.0
    %1758 = vmatpush1.xpose.msra.mxu0 0.0
    %1759 = vmatprep.subr.mxu0 0.0
    %1760 = vmatpush1.xpose.msra.mxu0 0.0
    %1761 = vmatprep.subr.mxu0 0.0
    %1762 = vmatpush1.xpose.msra.mxu0 0.0
    %1763 = vmatprep.subr.mxu0 0.0
    %1764 = vmatpush1.xpose.msra.mxu0 0.0
    %1765 = vmatprep.subr.mxu0 0.0
    %1766 = vmatpush1.xpose.msra.mxu0 0.0
    %1767 = vmatprep.subr.mxu0 0.0
    %1768 = vmatpush1.xpose.msra.mxu0 0.0
    %1769 = vmatprep.subr.mxu0 0.0
    %1770 = vmatpush1.xpose.msra.mxu0 0.0
    %1771 = vmatprep.subr.mxu0 0.0
    %1772 = vmatpush1.xpose.msra.mxu0 0.0
    %1773 = vmatprep.subr.mxu0 0.0
    %1774 = vmatpush1.xpose.msra.mxu0 0.0
    %1775 = vmatprep.subr.mxu0 0.0
    %1776 = vmatpush1.xpose.msra.mxu0 0.0
    %1777 = vmatprep.subr.mxu0 0.0
    %1778 = vmatpush1.xpose.msra.mxu0 0.0
    %1779 = vmatprep.subr.mxu0 0.0
    %1780 = vmatpush1.xpose.msra.mxu0 0.0
    %1781 = vmatprep.subr.mxu0 0.0
    %1782 = vmatpush1.xpose.msra.mxu0 0.0
    %1783 = vmatprep.subr.mxu0 0.0
    %1784 = vmatpush1.xpose.msra.mxu0 0.0
    %1785 = vmatprep.subr.mxu0 0.0
    %1786 = vmatpush1.xpose.msra.mxu0 0.0
    %1787 = vmatprep.subr.mxu0 0.0
    %1788 = vmatpush1.xpose.msra.mxu0 0.0
    %1789 = vmatprep.subr.mxu0 0.0
    %1790 = vmatpush1.xpose.msra.mxu0 0.0
    %1791 = vmatprep.mubr.f32.mxu0 0.0
    %1792 = vmatmul.mubr.f32.gmra.mrb[0].mxu0 %v1722
    %v1793 = vpop.f32.mrb[0].mxu0
    %v1794 = vadd.f32 0.0, %v1793
    %v1795 = vpop.f32.mrb[0].mxu0
    %1796 = vdwg.mxu0
    %v1797 = vmul.f32 %v1262, 0.35355338
    %v1798 = vmul.f32 %v1338, 0.35355338
    %v1799 = vmul.f32 %v1414, 0.35355338
    %v1800 = vmul.f32 %v1490, 0.35355338
    %v1801 = vmul.f32 %v1566, 0.35355338
    %v1802 = vmul.f32 %v1642, 0.35355338
    %v1803 = vmul.f32 %v1718, 0.35355338
    %v1804 = vmul.f32 %v1794, 0.35355338
    %v1805 = vsel %vm1188, %v1797, -inf
    %1806 = vmax.xlane.f32.xlu0 %v1805
    %v1807 = vpop.xlane.xlu0 %1806
    %v1808 = vsel %vm1188, %v1798, -inf
    %1809 = vmax.xlane.f32.xlu0 %v1808
    %v1810 = vpop.xlane.xlu0 %1809
    %v1811 = vsel %vm1188, %v1799, -inf
    %1812 = vmax.xlane.f32.xlu0 %v1811
    %v1813 = vpop.xlane.xlu0 %1812
    %v1814 = vsel %vm1188, %v1800, -inf
    %1815 = vmax.xlane.f32.xlu0 %v1814
    %v1816 = vpop.xlane.xlu0 %1815
    %v1817 = vsel %vm1188, %v1801, -inf
    %1818 = vmax.xlane.f32.xlu0 %v1817
    %v1819 = vpop.xlane.xlu0 %1818
    %v1820 = vsel %vm1188, %v1802, -inf
    %1821 = vmax.xlane.f32.xlu0 %v1820
    %v1822 = vpop.xlane.xlu0 %1821
    %v1823 = vsel %vm1188, %v1803, -inf
    %1824 = vmax.xlane.f32.xlu0 %v1823
    %v1825 = vpop.xlane.xlu0 %1824
    %v1826 = vsel %vm1188, %v1804, -inf
    %1827 = vmax.xlane.f32.xlu0 %v1826
    %v1828 = vpop.xlane.xlu0 %1827
    %v1829 = vsub.f32 %v1797, %v1807
    %v1830 = vsub.f32 %v1798, %v1810
    %v1831 = vsub.f32 %v1799, %v1813
    %v1832 = vsub.f32 %v1800, %v1816
    %v1833 = vsub.f32 %v1801, %v1819
    %v1834 = vsub.f32 %v1802, %v1822
    %v1835 = vsub.f32 %v1803, %v1825
    %v1836 = vsub.f32 %v1804, %v1828
    %v1837 = vmul.f32 %v1829, 1.442695
    %v1838 = vpow.pop %v1837
    %v1839 = vmul.f32 %v1830, 1.442695
    %v1840 = vpow.pop %v1839
    %v1841 = vmul.f32 %v1831, 1.442695
    %v1842 = vpow.pop %v1841
    %v1843 = vmul.f32 %v1832, 1.442695
    %v1844 = vpow.pop %v1843
    %v1845 = vmul.f32 %v1833, 1.442695
    %v1846 = vpow.pop %v1845
    %v1847 = vmul.f32 %v1834, 1.442695
    %v1848 = vpow.pop %v1847
    %v1849 = vmul.f32 %v1835, 1.442695
    %v1850 = vpow.pop %v1849
    %v1851 = vmul.f32 %v1836, 1.442695
    %v1852 = vpow.pop %v1851
    %v1853 = vsel %vm1188, %v1838, 0.0
    %1854 = vadd.xlane.f32.xlu0 %v1853
    %v1855 = vpop.xlane.xlu0 %1854
    %v1856 = vsel %vm1188, %v1840, 0.0
    %1857 = vadd.xlane.f32.xlu0 %v1856
    %v1858 = vpop.xlane.xlu0 %1857
    %v1859 = vsel %vm1188, %v1842, 0.0
    %1860 = vadd.xlane.f32.xlu0 %v1859
    %v1861 = vpop.xlane.xlu0 %1860
    %v1862 = vsel %vm1188, %v1844, 0.0
    %1863 = vadd.xlane.f32.xlu0 %v1862
    %v1864 = vpop.xlane.xlu0 %1863
    %v1865 = vsel %vm1188, %v1846, 0.0
    %1866 = vadd.xlane.f32.xlu0 %v1865
    %v1867 = vpop.xlane.xlu0 %1866
    %v1868 = vsel %vm1188, %v1848, 0.0
    %1869 = vadd.xlane.f32.xlu0 %v1868
    %v1870 = vpop.xlane.xlu0 %1869
    %v1871 = vsel %vm1188, %v1850, 0.0
    %1872 = vadd.xlane.f32.xlu0 %v1871
    %v1873 = vpop.xlane.xlu0 %1872
    %v1874 = vsel %vm1188, %v1852, 0.0
    %1875 = vadd.xlane.f32.xlu0 %v1874
    %v1876 = vpop.xlane.xlu0 %1875
    %v1877 = vrcp.pop %v1855
    %v1878 = vrcp.pop %v1858
    %v1879 = vrcp.pop %v1861
    %v1880 = vrcp.pop %v1864
    %v1881 = vrcp.pop %v1867
    %v1882 = vrcp.pop %v1870
    %v1883 = vrcp.pop %v1873
    %v1884 = vrcp.pop %v1876
    %v1885 = vmul.f32 %v1838, %v1877
    %v1886 = vmul.f32 %v1840, %v1878
    %v1887 = vmul.f32 %v1842, %v1879
    %v1888 = vmul.f32 %v1844, %v1880
    %v1889 = vmul.f32 %v1846, %v1881
    %v1890 = vmul.f32 %v1848, %v1882
    %v1891 = vmul.f32 %v1850, %v1883
    %v1892 = vmul.f32 %v1852, %v1884
    %v1894 = vsel %vm1188, %v1885, 0
    %1896 = vmatprep.subr.mxu0 0.0
    %1897 = vmatpush1.msra.mxu0 %v1116
    %1898 = vmatprep.subr.mxu0 0.0
    %1899 = vmatpush1.msra.mxu0 0.0
    %1900 = vmatprep.subr.mxu0 0.0
    %1901 = vmatpush1.msra.mxu0 0.0
    %1902 = vmatprep.subr.mxu0 0.0
    %1903 = vmatpush1.msra.mxu0 0.0
    %1904 = vmatprep.subr.mxu0 0.0
    %1905 = vmatpush1.msra.mxu0 0.0
    %1906 = vmatprep.subr.mxu0 0.0
    %1907 = vmatpush1.msra.mxu0 0.0
    %1908 = vmatprep.subr.mxu0 0.0
    %1909 = vmatpush1.msra.mxu0 0.0
    %1910 = vmatprep.subr.mxu0 0.0
    %1911 = vmatpush1.msra.mxu0 0.0
    %1912 = vmatprep.subr.mxu0 0.0
    %1913 = vmatpush1.msra.mxu0 0.0
    %1914 = vmatprep.subr.mxu0 0.0
    %1915 = vmatpush1.msra.mxu0 0.0
    %1916 = vmatprep.subr.mxu0 0.0
    %1917 = vmatpush1.msra.mxu0 0.0
    %1918 = vmatprep.subr.mxu0 0.0
    %1919 = vmatpush1.msra.mxu0 0.0
    %1920 = vmatprep.subr.mxu0 0.0
    %1921 = vmatpush1.msra.mxu0 0.0
    %1922 = vmatprep.subr.mxu0 0.0
    %1923 = vmatpush1.msra.mxu0 0.0
    %1924 = vmatprep.subr.mxu0 0.0
    %1925 = vmatpush1.msra.mxu0 0.0
    %1926 = vmatprep.subr.mxu0 0.0
    %1927 = vmatpush1.msra.mxu0 0.0
    %1928 = vmatprep.subr.mxu0 0.0
    %1929 = vmatpush1.msra.mxu0 0.0
    %1930 = vmatprep.subr.mxu0 0.0
    %1931 = vmatpush1.msra.mxu0 0.0
    %1932 = vmatprep.subr.mxu0 0.0
    %1933 = vmatpush1.msra.mxu0 0.0
    %1934 = vmatprep.subr.mxu0 0.0
    %1935 = vmatpush1.msra.mxu0 0.0
    %1936 = vmatprep.subr.mxu0 0.0
    %1937 = vmatpush1.msra.mxu0 0.0
    %1938 = vmatprep.subr.mxu0 0.0
    %1939 = vmatpush1.msra.mxu0 0.0
    %1940 = vmatprep.subr.mxu0 0.0
    %1941 = vmatpush1.msra.mxu0 0.0
    %1942 = vmatprep.subr.mxu0 0.0
    %1943 = vmatpush1.msra.mxu0 0.0
    %1944 = vmatprep.subr.mxu0 0.0
    %1945 = vmatpush1.msra.mxu0 0.0
    %1946 = vmatprep.subr.mxu0 0.0
    %1947 = vmatpush1.msra.mxu0 0.0
    %1948 = vmatprep.subr.mxu0 0.0
    %1949 = vmatpush1.msra.mxu0 0.0
    %1950 = vmatprep.subr.mxu0 0.0
    %1951 = vmatpush1.msra.mxu0 0.0
    %1952 = vmatprep.subr.mxu0 0.0
    %1953 = vmatpush1.msra.mxu0 0.0
    %1954 = vmatprep.subr.mxu0 0.0
    %1955 = vmatpush1.msra.mxu0 0.0
    %1956 = vmatprep.subr.mxu0 0.0
    %1957 = vmatpush1.msra.mxu0 0.0
    %1958 = vmatprep.subr.mxu0 0.0
    %1959 = vmatpush1.msra.mxu0 0.0
    %1960 = vmatprep.mubr.f32.mxu0 0.0
    %1961 = vmatmul.mubr.f32.gmra.mrb[0].mxu0 %v1894
    %v1962 = vpop.f32.mrb[0].mxu0
    %v1963 = vadd.f32 0.0, %v1962
    %v1964 = vpop.f32.mrb[0].mxu0
    %1965 = vdwg.mxu0
    %v1967 = vsel %vm1188, %v1886, 0
    %1969 = vmatprep.subr.mxu0 0.0
    %1970 = vmatpush1.msra.mxu0 %v1117
    %1971 = vmatprep.subr.mxu0 0.0
    %1972 = vmatpush1.msra.mxu0 0.0
    %1973 = vmatprep.subr.mxu0 0.0
    %1974 = vmatpush1.msra.mxu0 0.0
    %1975 = vmatprep.subr.mxu0 0.0
    %1976 = vmatpush1.msra.mxu0 0.0
    %1977 = vmatprep.subr.mxu0 0.0
    %1978 = vmatpush1.msra.mxu0 0.0
    %1979 = vmatprep.subr.mxu0 0.0
    %1980 = vmatpush1.msra.mxu0 0.0
    %1981 = vmatprep.subr.mxu0 0.0
    %1982 = vmatpush1.msra.mxu0 0.0
    %1983 = vmatprep.subr.mxu0 0.0
    %1984 = vmatpush1.msra.mxu0 0.0
    %1985 = vmatprep.subr.mxu0 0.0
    %1986 = vmatpush1.msra.mxu0 0.0
    %1987 = vmatprep.subr.mxu0 0.0
    %1988 = vmatpush1.msra.mxu0 0.0
    %1989 = vmatprep.subr.mxu0 0.0
    %1990 = vmatpush1.msra.mxu0 0.0
    %1991 = vmatprep.subr.mxu0 0.0
    %1992 = vmatpush1.msra.mxu0 0.0
    %1993 = vmatprep.subr.mxu0 0.0
    %1994 = vmatpush1.msra.mxu0 0.0
    %1995 = vmatprep.subr.mxu0 0.0
    %1996 = vmatpush1.msra.mxu0 0.0
    %1997 = vmatprep.subr.mxu0 0.0
    %1998 = vmatpush1.msra.mxu0 0.0
    %1999 = vmatprep.subr.mxu0 0.0
    %2000 = vmatpush1.msra.mxu0 0.0
    %2001 = vmatprep.subr.mxu0 0.0
    %2002 = vmatpush1.msra.mxu0 0.0
    %2003 = vmatprep.subr.mxu0 0.0
    %2004 = vmatpush1.msra.mxu0 0.0
    %2005 = vmatprep.subr.mxu0 0.0
    %2006 = vmatpush1.msra.mxu0 0.0
    %2007 = vmatprep.subr.mxu0 0.0
    %2008 = vmatpush1.msra.mxu0 0.0
    %2009 = vmatprep.subr.mxu0 0.0
    %2010 = vmatpush1.msra.mxu0 0.0
    %2011 = vmatprep.subr.mxu0 0.0
    %2012 = vmatpush1.msra.mxu0 0.0
    %2013 = vmatprep.subr.mxu0 0.0
    %2014 = vmatpush1.msra.mxu0 0.0
    %2015 = vmatprep.subr.mxu0 0.0
    %2016 = vmatpush1.msra.mxu0 0.0
    %2017 = vmatprep.subr.mxu0 0.0
    %2018 = vmatpush1.msra.mxu0 0.0
    %2019 = vmatprep.subr.mxu0 0.0
    %2020 = vmatpush1.msra.mxu0 0.0
    %2021 = vmatprep.subr.mxu0 0.0
    %2022 = vmatpush1.msra.mxu0 0.0
    %2023 = vmatprep.subr.mxu0 0.0
    %2024 = vmatpush1.msra.mxu0 0.0
    %2025 = vmatprep.subr.mxu0 0.0
    %2026 = vmatpush1.msra.mxu0 0.0
    %2027 = vmatprep.subr.mxu0 0.0
    %2028 = vmatpush1.msra.mxu0 0.0
    %2029 = vmatprep.subr.mxu0 0.0
    %2030 = vmatpush1.msra.mxu0 0.0
    %2031 = vmatprep.subr.mxu0 0.0
    %2032 = vmatpush1.msra.mxu0 0.0
    %2033 = vmatprep.mubr.f32.mxu0 0.0
    %2034 = vmatmul.mubr.f32.gmra.mrb[0].mxu0 %v1967
    %v2035 = vpop.f32.mrb[0].mxu0
    %v2036 = vadd.f32 0.0, %v2035
    %v2037 = vpop.f32.mrb[0].mxu0
    %2038 = vdwg.mxu0
    %v2040 = vsel %vm1188, %v1887, 0
    %2042 = vmatprep.subr.mxu0 0.0
    %2043 = vmatpush1.msra.mxu0 %v1118
    %2044 = vmatprep.subr.mxu0 0.0
    %2045 = vmatpush1.msra.mxu0 0.0
    %2046 = vmatprep.subr.mxu0 0.0
    %2047 = vmatpush1.msra.mxu0 0.0
    %2048 = vmatprep.subr.mxu0 0.0
    %2049 = vmatpush1.msra.mxu0 0.0
    %2050 = vmatprep.subr.mxu0 0.0
    %2051 = vmatpush1.msra.mxu0 0.0
    %2052 = vmatprep.subr.mxu0 0.0
    %2053 = vmatpush1.msra.mxu0 0.0
    %2054 = vmatprep.subr.mxu0 0.0
    %2055 = vmatpush1.msra.mxu0 0.0
    %2056 = vmatprep.subr.mxu0 0.0
    %2057 = vmatpush1.msra.mxu0 0.0
    %2058 = vmatprep.subr.mxu0 0.0
    %2059 = vmatpush1.msra.mxu0 0.0
    %2060 = vmatprep.subr.mxu0 0.0
    %2061 = vmatpush1.msra.mxu0 0.0
    %2062 = vmatprep.subr.mxu0 0.0
    %2063 = vmatpush1.msra.mxu0 0.0
    %2064 = vmatprep.subr.mxu0 0.0
    %2065 = vmatpush1.msra.mxu0 0.0
    %2066 = vmatprep.subr.mxu0 0.0
    %2067 = vmatpush1.msra.mxu0 0.0
    %2068 = vmatprep.subr.mxu0 0.0
    %2069 = vmatpush1.msra.mxu0 0.0
    %2070 = vmatprep.subr.mxu0 0.0
    %2071 = vmatpush1.msra.mxu0 0.0
    %2072 = vmatprep.subr.mxu0 0.0
    %2073 = vmatpush1.msra.mxu0 0.0
    %2074 = vmatprep.subr.mxu0 0.0
    %2075 = vmatpush1.msra.mxu0 0.0
    %2076 = vmatprep.subr.mxu0 0.0
    %2077 = vmatpush1.msra.mxu0 0.0
    %2078 = vmatprep.subr.mxu0 0.0
    %2079 = vmatpush1.msra.mxu0 0.0
    %2080 = vmatprep.subr.mxu0 0.0
    %2081 = vmatpush1.msra.mxu0 0.0
    %2082 = vmatprep.subr.mxu0 0.0
    %2083 = vmatpush1.msra.mxu0 0.0
    %2084 = vmatprep.subr.mxu0 0.0
    %2085 = vmatpush1.msra.mxu0 0.0
    %2086 = vmatprep.subr.mxu0 0.0
    %2087 = vmatpush1.msra.mxu0 0.0
    %2088 = vmatprep.subr.mxu0 0.0
    %2089 = vmatpush1.msra.mxu0 0.0
    %2090 = vmatprep.subr.mxu0 0.0
    %2091 = vmatpush1.msra.mxu0 0.0
    %2092 = vmatprep.subr.mxu0 0.0
    %2093 = vmatpush1.msra.mxu0 0.0
    %2094 = vmatprep.subr.mxu0 0.0
    %2095 = vmatpush1.msra.mxu0 0.0
    %2096 = vmatprep.subr.mxu0 0.0
    %2097 = vmatpush1.msra.mxu0 0.0
    %2098 = vmatprep.subr.mxu0 0.0
    %2099 = vmatpush1.msra.mxu0 0.0
    %2100 = vmatprep.subr.mxu0 0.0
    %2101 = vmatpush1.msra.mxu0 0.0
    %2102 = vmatprep.subr.mxu0 0.0
    %2103 = vmatpush1.msra.mxu0 0.0
    %2104 = vmatprep.subr.mxu0 0.0
    %2105 = vmatpush1.msra.mxu0 0.0
    %2106 = vmatprep.mubr.f32.mxu0 0.0
    %2107 = vmatmul.mubr.f32.gmra.mrb[0].mxu0 %v2040
    %v2108 = vpop.f32.mrb[0].mxu0
    %v2109 = vadd.f32 0.0, %v2108
    %v2110 = vpop.f32.mrb[0].mxu0
    %2111 = vdwg.mxu0
    %v2113 = vsel %vm1188, %v1888, 0
    %2115 = vmatprep.subr.mxu0 0.0
    %2116 = vmatpush1.msra.mxu0 %v1119
    %2117 = vmatprep.subr.mxu0 0.0
    %2118 = vmatpush1.msra.mxu0 0.0
    %2119 = vmatprep.subr.mxu0 0.0
    %2120 = vmatpush1.msra.mxu0 0.0
    %2121 = vmatprep.subr.mxu0 0.0
    %2122 = vmatpush1.msra.mxu0 0.0
    %2123 = vmatprep.subr.mxu0 0.0
    %2124 = vmatpush1.msra.mxu0 0.0
    %2125 = vmatprep.subr.mxu0 0.0
    %2126 = vmatpush1.msra.mxu0 0.0
    %2127 = vmatprep.subr.mxu0 0.0
    %2128 = vmatpush1.msra.mxu0 0.0
    %2129 = vmatprep.subr.mxu0 0.0
    %2130 = vmatpush1.msra.mxu0 0.0
    %2131 = vmatprep.subr.mxu0 0.0
    %2132 = vmatpush1.msra.mxu0 0.0
    %2133 = vmatprep.subr.mxu0 0.0
    %2134 = vmatpush1.msra.mxu0 0.0
    %2135 = vmatprep.subr.mxu0 0.0
    %2136 = vmatpush1.msra.mxu0 0.0
    %2137 = vmatprep.subr.mxu0 0.0
    %2138 = vmatpush1.msra.mxu0 0.0
    %2139 = vmatprep.subr.mxu0 0.0
    %2140 = vmatpush1.msra.mxu0 0.0
    %2141 = vmatprep.subr.mxu0 0.0
    %2142 = vmatpush1.msra.mxu0 0.0
    %2143 = vmatprep.subr.mxu0 0.0
    %2144 = vmatpush1.msra.mxu0 0.0
    %2145 = vmatprep.subr.mxu0 0.0
    %2146 = vmatpush1.msra.mxu0 0.0
    %2147 = vmatprep.subr.mxu0 0.0
    %2148 = vmatpush1.msra.mxu0 0.0
    %2149 = vmatprep.subr.mxu0 0.0
    %2150 = vmatpush1.msra.mxu0 0.0
    %2151 = vmatprep.subr.mxu0 0.0
    %2152 = vmatpush1.msra.mxu0 0.0
    %2153 = vmatprep.subr.mxu0 0.0
    %2154 = vmatpush1.msra.mxu0 0.0
    %2155 = vmatprep.subr.mxu0 0.0
    %2156 = vmatpush1.msra.mxu0 0.0
    %2157 = vmatprep.subr.mxu0 0.0
    %2158 = vmatpush1.msra.mxu0 0.0
    %2159 = vmatprep.subr.mxu0 0.0
    %2160 = vmatpush1.msra.mxu0 0.0
    %2161 = vmatprep.subr.mxu0 0.0
    %2162 = vmatpush1.msra.mxu0 0.0
    %2163 = vmatprep.subr.mxu0 0.0
    %2164 = vmatpush1.msra.mxu0 0.0
    %2165 = vmatprep.subr.mxu0 0.0
    %2166 = vmatpush1.msra.mxu0 0.0
    %2167 = vmatprep.subr.mxu0 0.0
    %2168 = vmatpush1.msra.mxu0 0.0
    %2169 = vmatprep.subr.mxu0 0.0
    %2170 = vmatpush1.msra.mxu0 0.0
    %2171 = vmatprep.subr.mxu0 0.0
    %2172 = vmatpush1.msra.mxu0 0.0
    %2173 = vmatprep.subr.mxu0 0.0
    %2174 = vmatpush1.msra.mxu0 0.0
    %2175 = vmatprep.subr.mxu0 0.0
    %2176 = vmatpush1.msra.mxu0 0.0
    %2177 = vmatprep.subr.mxu0 0.0
    %2178 = vmatpush1.msra.mxu0 0.0
    %2179 = vmatprep.mubr.f32.mxu0 0.0
    %2180 = vmatmul.mubr.f32.gmra.mrb[0].mxu0 %v2113
    %v2181 = vpop.f32.mrb[0].mxu0
    %v2182 = vadd.f32 0.0, %v2181
    %v2183 = vpop.f32.mrb[0].mxu0
    %2184 = vdwg.mxu0
    %v2186 = vsel %vm1188, %v1889, 0
    %2188 = vmatprep.subr.mxu0 0.0
    %2189 = vmatpush1.msra.mxu0 %v1184
    %2190 = vmatprep.subr.mxu0 0.0
    %2191 = vmatpush1.msra.mxu0 0.0
    %2192 = vmatprep.subr.mxu0 0.0
    %2193 = vmatpush1.msra.mxu0 0.0
    %2194 = vmatprep.subr.mxu0 0.0
    %2195 = vmatpush1.msra.mxu0 0.0
    %2196 = vmatprep.subr.mxu0 0.0
    %2197 = vmatpush1.msra.mxu0 0.0
    %2198 = vmatprep.subr.mxu0 0.0
    %2199 = vmatpush1.msra.mxu0 0.0
    %2200 = vmatprep.subr.mxu0 0.0
    %2201 = vmatpush1.msra.mxu0 0.0
    %2202 = vmatprep.subr.mxu0 0.0
    %2203 = vmatpush1.msra.mxu0 0.0
    %2204 = vmatprep.subr.mxu0 0.0
    %2205 = vmatpush1.msra.mxu0 0.0
    %2206 = vmatprep.subr.mxu0 0.0
    %2207 = vmatpush1.msra.mxu0 0.0
    %2208 = vmatprep.subr.mxu0 0.0
    %2209 = vmatpush1.msra.mxu0 0.0
    %2210 = vmatprep.subr.mxu0 0.0
    %2211 = vmatpush1.msra.mxu0 0.0
    %2212 = vmatprep.subr.mxu0 0.0
    %2213 = vmatpush1.msra.mxu0 0.0
    %2214 = vmatprep.subr.mxu0 0.0
    %2215 = vmatpush1.msra.mxu0 0.0
    %2216 = vmatprep.subr.mxu0 0.0
    %2217 = vmatpush1.msra.mxu0 0.0
    %2218 = vmatprep.subr.mxu0 0.0
    %2219 = vmatpush1.msra.mxu0 0.0
    %2220 = vmatprep.subr.mxu0 0.0
    %2221 = vmatpush1.msra.mxu0 0.0
    %2222 = vmatprep.subr.mxu0 0.0
    %2223 = vmatpush1.msra.mxu0 0.0
    %2224 = vmatprep.subr.mxu0 0.0
    %2225 = vmatpush1.msra.mxu0 0.0
    %2226 = vmatprep.subr.mxu0 0.0
    %2227 = vmatpush1.msra.mxu0 0.0
    %2228 = vmatprep.subr.mxu0 0.0
    %2229 = vmatpush1.msra.mxu0 0.0
    %2230 = vmatprep.subr.mxu0 0.0
    %2231 = vmatpush1.msra.mxu0 0.0
    %2232 = vmatprep.subr.mxu0 0.0
    %2233 = vmatpush1.msra.mxu0 0.0
    %2234 = vmatprep.subr.mxu0 0.0
    %2235 = vmatpush1.msra.mxu0 0.0
    %2236 = vmatprep.subr.mxu0 0.0
    %2237 = vmatpush1.msra.mxu0 0.0
    %2238 = vmatprep.subr.mxu0 0.0
    %2239 = vmatpush1.msra.mxu0 0.0
    %2240 = vmatprep.subr.mxu0 0.0
    %2241 = vmatpush1.msra.mxu0 0.0
    %2242 = vmatprep.subr.mxu0 0.0
    %2243 = vmatpush1.msra.mxu0 0.0
    %2244 = vmatprep.subr.mxu0 0.0
    %2245 = vmatpush1.msra.mxu0 0.0
    %2246 = vmatprep.subr.mxu0 0.0
    %2247 = vmatpush1.msra.mxu0 0.0
    %2248 = vmatprep.subr.mxu0 0.0
    %2249 = vmatpush1.msra.mxu0 0.0
    %2250 = vmatprep.subr.mxu0 0.0
    %2251 = vmatpush1.msra.mxu0 0.0
    %2252 = vmatprep.mubr.f32.mxu0 0.0
    %2253 = vmatmul.mubr.f32.gmra.mrb[0].mxu0 %v2186
    %v2254 = vpop.f32.mrb[0].mxu0
    %v2255 = vadd.f32 0.0, %v2254
    %v2256 = vpop.f32.mrb[0].mxu0
    %2257 = vdwg.mxu0
    %v2259 = vsel %vm1188, %v1890, 0
    %2261 = vmatprep.subr.mxu0 0.0
    %2262 = vmatpush1.msra.mxu0 %v1185
    %2263 = vmatprep.subr.mxu0 0.0
    %2264 = vmatpush1.msra.mxu0 0.0
    %2265 = vmatprep.subr.mxu0 0.0
    %2266 = vmatpush1.msra.mxu0 0.0
    %2267 = vmatprep.subr.mxu0 0.0
    %2268 = vmatpush1.msra.mxu0 0.0
    %2269 = vmatprep.subr.mxu0 0.0
    %2270 = vmatpush1.msra.mxu0 0.0
    %2271 = vmatprep.subr.mxu0 0.0
    %2272 = vmatpush1.msra.mxu0 0.0
    %2273 = vmatprep.subr.mxu0 0.0
    %2274 = vmatpush1.msra.mxu0 0.0
    %2275 = vmatprep.subr.mxu0 0.0
    %2276 = vmatpush1.msra.mxu0 0.0
    %2277 = vmatprep.subr.mxu0 0.0
    %2278 = vmatpush1.msra.mxu0 0.0
    %2279 = vmatprep.subr.mxu0 0.0
    %2280 = vmatpush1.msra.mxu0 0.0
    %2281 = vmatprep.subr.mxu0 0.0
    %2282 = vmatpush1.msra.mxu0 0.0
    %2283 = vmatprep.subr.mxu0 0.0
    %2284 = vmatpush1.msra.mxu0 0.0
    %2285 = vmatprep.subr.mxu0 0.0
    %2286 = vmatpush1.msra.mxu0 0.0
    %2287 = vmatprep.subr.mxu0 0.0
    %2288 = vmatpush1.msra.mxu0 0.0
    %2289 = vmatprep.subr.mxu0 0.0
    %2290 = vmatpush1.msra.mxu0 0.0
    %2291 = vmatprep.subr.mxu0 0.0
    %2292 = vmatpush1.msra.mxu0 0.0
    %2293 = vmatprep.subr.mxu0 0.0
    %2294 = vmatpush1.msra.mxu0 0.0
    %2295 = vmatprep.subr.mxu0 0.0
    %2296 = vmatpush1.msra.mxu0 0.0
    %2297 = vmatprep.subr.mxu0 0.0
    %2298 = vmatpush1.msra.mxu0 0.0
    %2299 = vmatprep.subr.mxu0 0.0
    %2300 = vmatpush1.msra.mxu0 0.0
    %2301 = vmatprep.subr.mxu0 0.0
    %2302 = vmatpush1.msra.mxu0 0.0
    %2303 = vmatprep.subr.mxu0 0.0
    %2304 = vmatpush1.msra.mxu0 0.0
    %2305 = vmatprep.subr.mxu0 0.0
    %2306 = vmatpush1.msra.mxu0 0.0
    %2307 = vmatprep.subr.mxu0 0.0
    %2308 = vmatpush1.msra.mxu0 0.0
    %2309 = vmatprep.subr.mxu0 0.0
    %2310 = vmatpush1.msra.mxu0 0.0
    %2311 = vmatprep.subr.mxu0 0.0
    %2312 = vmatpush1.msra.mxu0 0.0
    %2313 = vmatprep.subr.mxu0 0.0
    %2314 = vmatpush1.msra.mxu0 0.0
    %2315 = vmatprep.subr.mxu0 0.0
    %2316 = vmatpush1.msra.mxu0 0.0
    %2317 = vmatprep.subr.mxu0 0.0
    %2318 = vmatpush1.msra.mxu0 0.0
    %2319 = vmatprep.subr.mxu0 0.0
    %2320 = vmatpush1.msra.mxu0 0.0
    %2321 = vmatprep.subr.mxu0 0.0
    %2322 = vmatpush1.msra.mxu0 0.0
    %2323 = vmatprep.subr.mxu0 0.0
    %2324 = vmatpush1.msra.mxu0 0.0
    %2325 = vmatprep.mubr.f32.mxu0 0.0
    %2326 = vmatmul.mubr.f32.gmra.mrb[0].mxu0 %v2259
    %v2327 = vpop.f32.mrb[0].mxu0
    %v2328 = vadd.f32 0.0, %v2327
    %v2329 = vpop.f32.mrb[0].mxu0
    %2330 = vdwg.mxu0
    %v2332 = vsel %vm1188, %v1891, 0
    %2334 = vmatprep.subr.mxu0 0.0
    %2335 = vmatpush1.msra.mxu0 %v1186
    %2336 = vmatprep.subr.mxu0 0.0
    %2337 = vmatpush1.msra.mxu0 0.0
    %2338 = vmatprep.subr.mxu0 0.0
    %2339 = vmatpush1.msra.mxu0 0.0
    %2340 = vmatprep.subr.mxu0 0.0
    %2341 = vmatpush1.msra.mxu0 0.0
    %2342 = vmatprep.subr.mxu0 0.0
    %2343 = vmatpush1.msra.mxu0 0.0
    %2344 = vmatprep.subr.mxu0 0.0
    %2345 = vmatpush1.msra.mxu0 0.0
    %2346 = vmatprep.subr.mxu0 0.0
    %2347 = vmatpush1.msra.mxu0 0.0
    %2348 = vmatprep.subr.mxu0 0.0
    %2349 = vmatpush1.msra.mxu0 0.0
    %2350 = vmatprep.subr.mxu0 0.0
    %2351 = vmatpush1.msra.mxu0 0.0
    %2352 = vmatprep.subr.mxu0 0.0
    %2353 = vmatpush1.msra.mxu0 0.0
    %2354 = vmatprep.subr.mxu0 0.0
    %2355 = vmatpush1.msra.mxu0 0.0
    %2356 = vmatprep.subr.mxu0 0.0
    %2357 = vmatpush1.msra.mxu0 0.0
    %2358 = vmatprep.subr.mxu0 0.0
    %2359 = vmatpush1.msra.mxu0 0.0
    %2360 = vmatprep.subr.mxu0 0.0
    %2361 = vmatpush1.msra.mxu0 0.0
    %2362 = vmatprep.subr.mxu0 0.0
    %2363 = vmatpush1.msra.mxu0 0.0
    %2364 = vmatprep.subr.mxu0 0.0
    %2365 = vmatpush1.msra.mxu0 0.0
    %2366 = vmatprep.subr.mxu0 0.0
    %2367 = vmatpush1.msra.mxu0 0.0
    %2368 = vmatprep.subr.mxu0 0.0
    %2369 = vmatpush1.msra.mxu0 0.0
    %2370 = vmatprep.subr.mxu0 0.0
    %2371 = vmatpush1.msra.mxu0 0.0
    %2372 = vmatprep.subr.mxu0 0.0
    %2373 = vmatpush1.msra.mxu0 0.0
    %2374 = vmatprep.subr.mxu0 0.0
    %2375 = vmatpush1.msra.mxu0 0.0
    %2376 = vmatprep.subr.mxu0 0.0
    %2377 = vmatpush1.msra.mxu0 0.0
    %2378 = vmatprep.subr.mxu0 0.0
    %2379 = vmatpush1.msra.mxu0 0.0
    %2380 = vmatprep.subr.mxu0 0.0
    %2381 = vmatpush1.msra.mxu0 0.0
    %2382 = vmatprep.subr.mxu0 0.0
    %2383 = vmatpush1.msra.mxu0 0.0
    %2384 = vmatprep.subr.mxu0 0.0
    %2385 = vmatpush1.msra.mxu0 0.0
    %2386 = vmatprep.subr.mxu0 0.0
    %2387 = vmatpush1.msra.mxu0 0.0
    %2388 = vmatprep.subr.mxu0 0.0
    %2389 = vmatpush1.msra.mxu0 0.0
    %2390 = vmatprep.subr.mxu0 0.0
    %2391 = vmatpush1.msra.mxu0 0.0
    %2392 = vmatprep.subr.mxu0 0.0
    %2393 = vmatpush1.msra.mxu0 0.0
    %2394 = vmatprep.subr.mxu0 0.0
    %2395 = vmatpush1.msra.mxu0 0.0
    %2396 = vmatprep.subr.mxu0 0.0
    %2397 = vmatpush1.msra.mxu0 0.0
    %2398 = vmatprep.mubr.f32.mxu0 0.0
    %2399 = vmatmul.mubr.f32.gmra.mrb[0].mxu0 %v2332
    %v2400 = vpop.f32.mrb[0].mxu0
    %v2401 = vadd.f32 0.0, %v2400
    %v2402 = vpop.f32.mrb[0].mxu0
    %2403 = vdwg.mxu0
    %v2405 = vsel %vm1188, %v1892, 0
    %2407 = vmatprep.subr.mxu0 0.0
    %2408 = vmatpush1.msra.mxu0 %v1187
    %2409 = vmatprep.subr.mxu0 0.0
    %2410 = vmatpush1.msra.mxu0 0.0
    %2411 = vmatprep.subr.mxu0 0.0
    %2412 = vmatpush1.msra.mxu0 0.0
    %2413 = vmatprep.subr.mxu0 0.0
    %2414 = vmatpush1.msra.mxu0 0.0
    %2415 = vmatprep.subr.mxu0 0.0
    %2416 = vmatpush1.msra.mxu0 0.0
    %2417 = vmatprep.subr.mxu0 0.0
    %2418 = vmatpush1.msra.mxu0 0.0
    %2419 = vmatprep.subr.mxu0 0.0
    %2420 = vmatpush1.msra.mxu0 0.0
    %2421 = vmatprep.subr.mxu0 0.0
    %2422 = vmatpush1.msra.mxu0 0.0
    %2423 = vmatprep.subr.mxu0 0.0
    %2424 = vmatpush1.msra.mxu0 0.0
    %2425 = vmatprep.subr.mxu0 0.0
    %2426 = vmatpush1.msra.mxu0 0.0
    %2427 = vmatprep.subr.mxu0 0.0
    %2428 = vmatpush1.msra.mxu0 0.0
    %2429 = vmatprep.subr.mxu0 0.0
    %2430 = vmatpush1.msra.mxu0 0.0
    %2431 = vmatprep.subr.mxu0 0.0
    %2432 = vmatpush1.msra.mxu0 0.0
    %2433 = vmatprep.subr.mxu0 0.0
    %2434 = vmatpush1.msra.mxu0 0.0
    %2435 = vmatprep.subr.mxu0 0.0
    %2436 = vmatpush1.msra.mxu0 0.0
    %2437 = vmatprep.subr.mxu0 0.0
    %2438 = vmatpush1.msra.mxu0 0.0
    %2439 = vmatprep.subr.mxu0 0.0
    %2440 = vmatpush1.msra.mxu0 0.0
    %2441 = vmatprep.subr.mxu0 0.0
    %2442 = vmatpush1.msra.mxu0 0.0
    %2443 = vmatprep.subr.mxu0 0.0
    %2444 = vmatpush1.msra.mxu0 0.0
    %2445 = vmatprep.subr.mxu0 0.0
    %2446 = vmatpush1.msra.mxu0 0.0
    %2447 = vmatprep.subr.mxu0 0.0
    %2448 = vmatpush1.msra.mxu0 0.0
    %2449 = vmatprep.subr.mxu0 0.0
    %2450 = vmatpush1.msra.mxu0 0.0
    %2451 = vmatprep.subr.mxu0 0.0
    %2452 = vmatpush1.msra.mxu0 0.0
    %2453 = vmatprep.subr.mxu0 0.0
    %2454 = vmatpush1.msra.mxu0 0.0
    %2455 = vmatprep.subr.mxu0 0.0
    %2456 = vmatpush1.msra.mxu0 0.0
    %2457 = vmatprep.subr.mxu0 0.0
    %2458 = vmatpush1.msra.mxu0 0.0
    %2459 = vmatprep.subr.mxu0 0.0
    %2460 = vmatpush1.msra.mxu0 0.0
    %2461 = vmatprep.subr.mxu0 0.0
    %2462 = vmatpush1.msra.mxu0 0.0
    %2463 = vmatprep.subr.mxu0 0.0
    %2464 = vmatpush1.msra.mxu0 0.0
    %2465 = vmatprep.subr.mxu0 0.0
    %2466 = vmatpush1.msra.mxu0 0.0
    %2467 = vmatprep.subr.mxu0 0.0
    %2468 = vmatpush1.msra.mxu0 0.0
    %2469 = vmatprep.subr.mxu0 0.0
    %2470 = vmatpush1.msra.mxu0 0.0
    %2471 = vmatprep.mubr.f32.mxu0 0.0
    %2472 = vmatmul.mubr.f32.gmra.mrb[0].mxu0 %v2405
    %v2473 = vpop.f32.mrb[0].mxu0
    %v2474 = vadd.f32 0.0, %v2473
    %v2475 = vpop.f32.mrb[0].mxu0
    %2476 = vdwg.mxu0
    %v2478 = vsel %vm1188, %v1963, 0
    %v2481 = vsel %vm1188, %v2255, 0
    %2483 = vmatprep.subr.mxu0 0.0
    %2484 = vmatpush1.msra.mxu0 %v58
    %2485 = vmatprep.subr.mxu0 0.0
    %2486 = vmatpush1.msra.mxu0 0.0
    %2487 = vmatprep.subr.mxu0 0.0
    %2488 = vmatpush1.msra.mxu0 0.0
    %2489 = vmatprep.subr.mxu0 0.0
    %2490 = vmatpush1.msra.mxu0 0.0
    %2491 = vmatprep.subr.mxu0 0.0
    %2492 = vmatpush1.msra.mxu0 0.0
    %2493 = vmatprep.subr.mxu0 0.0
    %2494 = vmatpush1.msra.mxu0 0.0
    %2495 = vmatprep.subr.mxu0 0.0
    %2496 = vmatpush1.msra.mxu0 0.0
    %2497 = vmatprep.subr.mxu0 0.0
    %2498 = vmatpush1.msra.mxu0 0.0
    %2499 = vmatprep.subr.mxu0 0.0
    %2500 = vmatpush1.msra.mxu0 0.0
    %2501 = vmatprep.subr.mxu0 0.0
    %2502 = vmatpush1.msra.mxu0 0.0
    %2503 = vmatprep.subr.mxu0 0.0
    %2504 = vmatpush1.msra.mxu0 0.0
    %2505 = vmatprep.subr.mxu0 0.0
    %2506 = vmatpush1.msra.mxu0 0.0
    %2507 = vmatprep.subr.mxu0 0.0
    %2508 = vmatpush1.msra.mxu0 0.0
    %2509 = vmatprep.subr.mxu0 0.0
    %2510 = vmatpush1.msra.mxu0 0.0
    %2511 = vmatprep.subr.mxu0 0.0
    %2512 = vmatpush1.msra.mxu0 0.0
    %2513 = vmatprep.subr.mxu0 0.0
    %2514 = vmatpush1.msra.mxu0 0.0
    %2515 = vmatprep.subr.mxu0 0.0
    %2516 = vmatpush1.msra.mxu0 0.0
    %2517 = vmatprep.subr.mxu0 0.0
    %2518 = vmatpush1.msra.mxu0 0.0
    %2519 = vmatprep.subr.mxu0 0.0
    %2520 = vmatpush1.msra.mxu0 0.0
    %2521 = vmatprep.subr.mxu0 0.0
    %2522 = vmatpush1.msra.mxu0 0.0
    %2523 = vmatprep.subr.mxu0 0.0
    %2524 = vmatpush1.msra.mxu0 0.0
    %2525 = vmatprep.subr.mxu0 0.0
    %2526 = vmatpush1.msra.mxu0 0.0
    %2527 = vmatprep.subr.mxu0 0.0
    %2528 = vmatpush1.msra.mxu0 0.0
    %2529 = vmatprep.subr.mxu0 0.0
    %2530 = vmatpush1.msra.mxu0 0.0
    %2531 = vmatprep.subr.mxu0 0.0
    %2532 = vmatpush1.msra.mxu0 0.0
    %2533 = vmatprep.subr.mxu0 0.0
    %2534 = vmatpush1.msra.mxu0 0.0
    %2535 = vmatprep.subr.mxu0 0.0
    %2536 = vmatpush1.msra.mxu0 0.0
    %2537 = vmatprep.subr.mxu0 0.0
    %2538 = vmatpush1.msra.mxu0 0.0
    %2539 = vmatprep.subr.mxu0 0.0
    %2540 = vmatpush1.msra.mxu0 0.0
    %2541 = vmatprep.subr.mxu0 0.0
    %2542 = vmatpush1.msra.mxu0 0.0
    %2543 = vmatprep.subr.mxu0 0.0
    %2544 = vmatpush1.msra.mxu0 0.0
    %2545 = vmatprep.subr.mxu0 0.0
    %2546 = vmatpush1.msra.mxu0 0.0
    %2547 = vmatprep.mubr.f32.mxu0 0.0
    %2548 = vmatmul.mubr.f32.gmra.mrb[0].mxu0 %v2478
    %v2549 = vpop.f32.mrb[0].mxu0
    %v2550 = vadd.f32 0.0, %v2549
    %v2551 = vpop.f32.mrb[0].mxu0
    %2552 = vmatprep.mubr.f32.mxu0 0.0
    %2553 = vmatmul.mubr.f32.gmra.mrb[0].mxu0 %v2481
    %v2554 = vpop.f32.mrb[0].mxu0
    %v2555 = vadd.f32 0.0, %v2554
    %v2556 = vpop.f32.mrb[0].mxu0
    %2557 = vdwg.mxu0
    %v2559 = vsel %vm1188, %v2036, 0
    %v2562 = vsel %vm1188, %v2328, 0
    %2564 = vmatprep.subr.mxu0 0.0
    %2565 = vmatpush1.msra.mxu0 %v59
    %2566 = vmatprep.subr.mxu0 0.0
    %2567 = vmatpush1.msra.mxu0 0.0
    %2568 = vmatprep.subr.mxu0 0.0
    %2569 = vmatpush1.msra.mxu0 0.0
    %2570 = vmatprep.subr.mxu0 0.0
    %2571 = vmatpush1.msra.mxu0 0.0
    %2572 = vmatprep.subr.mxu0 0.0
    %2573 = vmatpush1.msra.mxu0 0.0
    %2574 = vmatprep.subr.mxu0 0.0
    %2575 = vmatpush1.msra.mxu0 0.0
    %2576 = vmatprep.subr.mxu0 0.0
    %2577 = vmatpush1.msra.mxu0 0.0
    %2578 = vmatprep.subr.mxu0 0.0
    %2579 = vmatpush1.msra.mxu0 0.0
    %2580 = vmatprep.subr.mxu0 0.0
    %2581 = vmatpush1.msra.mxu0 0.0
    %2582 = vmatprep.subr.mxu0 0.0
    %2583 = vmatpush1.msra.mxu0 0.0
    %2584 = vmatprep.subr.mxu0 0.0
    %2585 = vmatpush1.msra.mxu0 0.0
    %2586 = vmatprep.subr.mxu0 0.0
    %2587 = vmatpush1.msra.mxu0 0.0
    %2588 = vmatprep.subr.mxu0 0.0
    %2589 = vmatpush1.msra.mxu0 0.0
    %2590 = vmatprep.subr.mxu0 0.0
    %2591 = vmatpush1.msra.mxu0 0.0
    %2592 = vmatprep.subr.mxu0 0.0
    %2593 = vmatpush1.msra.mxu0 0.0
    %2594 = vmatprep.subr.mxu0 0.0
    %2595 = vmatpush1.msra.mxu0 0.0
    %2596 = vmatprep.subr.mxu0 0.0
    %2597 = vmatpush1.msra.mxu0 0.0
    %2598 = vmatprep.subr.mxu0 0.0
    %2599 = vmatpush1.msra.mxu0 0.0
    %2600 = vmatprep.subr.mxu0 0.0
    %2601 = vmatpush1.msra.mxu0 0.0
    %2602 = vmatprep.subr.mxu0 0.0
    %2603 = vmatpush1.msra.mxu0 0.0
    %2604 = vmatprep.subr.mxu0 0.0
    %2605 = vmatpush1.msra.mxu0 0.0
    %2606 = vmatprep.subr.mxu0 0.0
    %2607 = vmatpush1.msra.mxu0 0.0
    %2608 = vmatprep.subr.mxu0 0.0
    %2609 = vmatpush1.msra.mxu0 0.0
    %2610 = vmatprep.subr.mxu0 0.0
    %2611 = vmatpush1.msra.mxu0 0.0
    %2612 = vmatprep.subr.mxu0 0.0
    %2613 = vmatpush1.msra.mxu0 0.0
    %2614 = vmatprep.subr.mxu0 0.0
    %2615 = vmatpush1.msra.mxu0 0.0
    %2616 = vmatprep.subr.mxu0 0.0
    %2617 = vmatpush1.msra.mxu0 0.0
    %2618 = vmatprep.subr.mxu0 0.0
    %2619 = vmatpush1.msra.mxu0 0.0
    %2620 = vmatprep.subr.mxu0 0.0
    %2621 = vmatpush1.msra.mxu0 0.0
    %2622 = vmatprep.subr.mxu0 0.0
    %2623 = vmatpush1.msra.mxu0 0.0
    %2624 = vmatprep.subr.mxu0 0.0
    %2625 = vmatpush1.msra.mxu0 0.0
    %2626 = vmatprep.subr.mxu0 0.0
    %2627 = vmatpush1.msra.mxu0 0.0
    %2628 = vmatprep.mubr.f32.mxu0 0.0
    %2629 = vmatmul.mubr.f32.gmra.mrb[0].mxu0 %v2559
    %v2630 = vpop.f32.mrb[0].mxu0
    %v2631 = vadd.f32 0.0, %v2630
    %v2632 = vpop.f32.mrb[0].mxu0
    %2633 = vmatprep.mubr.f32.mxu0 0.0
    %2634 = vmatmul.mubr.f32.gmra.mrb[0].mxu0 %v2562
    %v2635 = vpop.f32.mrb[0].mxu0
    %v2636 = vadd.f32 0.0, %v2635
    %v2637 = vpop.f32.mrb[0].mxu0
    %2638 = vdwg.mxu0
    %v2640 = vsel %vm1188, %v2109, 0
    %v2643 = vsel %vm1188, %v2401, 0
    %2645 = vmatprep.subr.mxu0 0.0
    %2646 = vmatpush1.msra.mxu0 %v60
    %2647 = vmatprep.subr.mxu0 0.0
    %2648 = vmatpush1.msra.mxu0 0.0
    %2649 = vmatprep.subr.mxu0 0.0
    %2650 = vmatpush1.msra.mxu0 0.0
    %2651 = vmatprep.subr.mxu0 0.0
    %2652 = vmatpush1.msra.mxu0 0.0
    %2653 = vmatprep.subr.mxu0 0.0
    %2654 = vmatpush1.msra.mxu0 0.0
    %2655 = vmatprep.subr.mxu0 0.0
    %2656 = vmatpush1.msra.mxu0 0.0
    %2657 = vmatprep.subr.mxu0 0.0
    %2658 = vmatpush1.msra.mxu0 0.0
    %2659 = vmatprep.subr.mxu0 0.0
    %2660 = vmatpush1.msra.mxu0 0.0
    %2661 = vmatprep.subr.mxu0 0.0
    %2662 = vmatpush1.msra.mxu0 0.0
    %2663 = vmatprep.subr.mxu0 0.0
    %2664 = vmatpush1.msra.mxu0 0.0
    %2665 = vmatprep.subr.mxu0 0.0
    %2666 = vmatpush1.msra.mxu0 0.0
    %2667 = vmatprep.subr.mxu0 0.0
    %2668 = vmatpush1.msra.mxu0 0.0
    %2669 = vmatprep.subr.mxu0 0.0
    %2670 = vmatpush1.msra.mxu0 0.0
    %2671 = vmatprep.subr.mxu0 0.0
    %2672 = vmatpush1.msra.mxu0 0.0
    %2673 = vmatprep.subr.mxu0 0.0
    %2674 = vmatpush1.msra.mxu0 0.0
    %2675 = vmatprep.subr.mxu0 0.0
    %2676 = vmatpush1.msra.mxu0 0.0
    %2677 = vmatprep.subr.mxu0 0.0
    %2678 = vmatpush1.msra.mxu0 0.0
    %2679 = vmatprep.subr.mxu0 0.0
    %2680 = vmatpush1.msra.mxu0 0.0
    %2681 = vmatprep.subr.mxu0 0.0
    %2682 = vmatpush1.msra.mxu0 0.0
    %2683 = vmatprep.subr.mxu0 0.0
    %2684 = vmatpush1.msra.mxu0 0.0
    %2685 = vmatprep.subr.mxu0 0.0
    %2686 = vmatpush1.msra.mxu0 0.0
    %2687 = vmatprep.subr.mxu0 0.0
    %2688 = vmatpush1.msra.mxu0 0.0
    %2689 = vmatprep.subr.mxu0 0.0
    %2690 = vmatpush1.msra.mxu0 0.0
    %2691 = vmatprep.subr.mxu0 0.0
    %2692 = vmatpush1.msra.mxu0 0.0
    %2693 = vmatprep.subr.mxu0 0.0
    %2694 = vmatpush1.msra.mxu0 0.0
    %2695 = vmatprep.subr.mxu0 0.0
    %2696 = vmatpush1.msra.mxu0 0.0
    %2697 = vmatprep.subr.mxu0 0.0
    %2698 = vmatpush1.msra.mxu0 0.0
    %2699 = vmatprep.subr.mxu0 0.0
    %2700 = vmatpush1.msra.mxu0 0.0
    %2701 = vmatprep.subr.mxu0 0.0
    %2702 = vmatpush1.msra.mxu0 0.0
    %2703 = vmatprep.subr.mxu0 0.0
    %2704 = vmatpush1.msra.mxu0 0.0
    %2705 = vmatprep.subr.mxu0 0.0
    %2706 = vmatpush1.msra.mxu0 0.0
    %2707 = vmatprep.subr.mxu0 0.0
    %2708 = vmatpush1.msra.mxu0 0.0
    %2709 = vmatprep.mubr.f32.mxu0 0.0
    %2710 = vmatmul.mubr.f32.gmra.mrb[0].mxu0 %v2640
    %v2711 = vpop.f32.mrb[0].mxu0
    %v2712 = vadd.f32 0.0, %v2711
    %v2713 = vpop.f32.mrb[0].mxu0
    %2714 = vmatprep.mubr.f32.mxu0 0.0
    %2715 = vmatmul.mubr.f32.gmra.mrb[0].mxu0 %v2643
    %v2716 = vpop.f32.mrb[0].mxu0
    %v2717 = vadd.f32 0.0, %v2716
    %v2718 = vpop.f32.mrb[0].mxu0
    %2719 = vdwg.mxu0
    %v2721 = vsel %vm1188, %v2182, 0
    %v2724 = vsel %vm1188, %v2474, 0
    %2726 = vmatprep.subr.mxu0 0.0
    %2727 = vmatpush1.msra.mxu0 %v61
    %2728 = vmatprep.subr.mxu0 0.0
    %2729 = vmatpush1.msra.mxu0 0.0
    %2730 = vmatprep.subr.mxu0 0.0
    %2731 = vmatpush1.msra.mxu0 0.0
    %2732 = vmatprep.subr.mxu0 0.0
    %2733 = vmatpush1.msra.mxu0 0.0
    %2734 = vmatprep.subr.mxu0 0.0
    %2735 = vmatpush1.msra.mxu0 0.0
    %2736 = vmatprep.subr.mxu0 0.0
    %2737 = vmatpush1.msra.mxu0 0.0
    %2738 = vmatprep.subr.mxu0 0.0
    %2739 = vmatpush1.msra.mxu0 0.0
    %2740 = vmatprep.subr.mxu0 0.0
    %2741 = vmatpush1.msra.mxu0 0.0
    %2742 = vmatprep.subr.mxu0 0.0
    %2743 = vmatpush1.msra.mxu0 0.0
    %2744 = vmatprep.subr.mxu0 0.0
    %2745 = vmatpush1.msra.mxu0 0.0
    %2746 = vmatprep.subr.mxu0 0.0
    %2747 = vmatpush1.msra.mxu0 0.0
    %2748 = vmatprep.subr.mxu0 0.0
    %2749 = vmatpush1.msra.mxu0 0.0
    %2750 = vmatprep.subr.mxu0 0.0
    %2751 = vmatpush1.msra.mxu0 0.0
    %2752 = vmatprep.subr.mxu0 0.0
    %2753 = vmatpush1.msra.mxu0 0.0
    %2754 = vmatprep.subr.mxu0 0.0
    %2755 = vmatpush1.msra.mxu0 0.0
    %2756 = vmatprep.subr.mxu0 0.0
    %2757 = vmatpush1.msra.mxu0 0.0
    %2758 = vmatprep.subr.mxu0 0.0
    %2759 = vmatpush1.msra.mxu0 0.0
    %2760 = vmatprep.subr.mxu0 0.0
    %2761 = vmatpush1.msra.mxu0 0.0
    %2762 = vmatprep.subr.mxu0 0.0
    %2763 = vmatpush1.msra.mxu0 0.0
    %2764 = vmatprep.subr.mxu0 0.0
    %2765 = vmatpush1.msra.mxu0 0.0
    %2766 = vmatprep.subr.mxu0 0.0
    %2767 = vmatpush1.msra.mxu0 0.0
    %2768 = vmatprep.subr.mxu0 0.0
    %2769 = vmatpush1.msra.mxu0 0.0
    %2770 = vmatprep.subr.mxu0 0.0
    %2771 = vmatpush1.msra.mxu0 0.0
    %2772 = vmatprep.subr.mxu0 0.0
    %2773 = vmatpush1.msra.mxu0 0.0
    %2774 = vmatprep.subr.mxu0 0.0
    %2775 = vmatpush1.msra.mxu0 0.0
    %2776 = vmatprep.subr.mxu0 0.0
    %2777 = vmatpush1.msra.mxu0 0.0
    %2778 = vmatprep.subr.mxu0 0.0
    %2779 = vmatpush1.msra.mxu0 0.0
    %2780 = vmatprep.subr.mxu0 0.0
    %2781 = vmatpush1.msra.mxu0 0.0
    %2782 = vmatprep.subr.mxu0 0.0
    %2783 = vmatpush1.msra.mxu0 0.0
    %2784 = vmatprep.subr.mxu0 0.0
    %2785 = vmatpush1.msra.mxu0 0.0
    %2786 = vmatprep.subr.mxu0 0.0
    %2787 = vmatpush1.msra.mxu0 0.0
    %2788 = vmatprep.subr.mxu0 0.0
    %2789 = vmatpush1.msra.mxu0 0.0
    %2790 = vmatprep.mubr.f32.mxu0 0.0
    %2791 = vmatmul.mubr.f32.gmra.mrb[0].mxu0 %v2721
    %v2792 = vpop.f32.mrb[0].mxu0
    %v2793 = vadd.f32 0.0, %v2792
    %v2794 = vpop.f32.mrb[0].mxu0
    %2795 = vmatprep.mubr.f32.mxu0 0.0
    %2796 = vmatmul.mubr.f32.gmra.mrb[0].mxu0 %v2724
    %v2797 = vpop.f32.mrb[0].mxu0
    %v2798 = vadd.f32 0.0, %v2797
    %v2799 = vpop.f32.mrb[0].mxu0
    %2800 = vdwg.mxu0
    %v2801 = vsel %vm62, %v2550, 0.0
    %v2802 = vsel %vm62, %v2631, 0.0
    %v2803 = vadd.f32 %v2801, %v2802
    %v2804 = vsel %vm62, %v2712, 0.0
    %v2805 = vadd.f32 %v2803, %v2804
    %v2806 = vsel %vm62, %v2793, 0.0
    %v2807 = vadd.f32 %v2805, %v2806
    %v2808 = vsel %vm62, %v2555, 0.0
    %v2809 = vsel %vm62, %v2636, 0.0
    %v2810 = vadd.f32 %v2808, %v2809
    %v2811 = vsel %vm62, %v2717, 0.0
    %v2812 = vadd.f32 %v2810, %v2811
    %v2813 = vsel %vm62, %v2798, 0.0
    %v2814 = vadd.f32 %v2812, %v2813
    %v2815 = vtanh.pop %v2807
    %v2816 = vtanh.pop %v2814
    %2817 = vst.msk [vmem:[#allocation7] sm:$0xff] %vm62, %v2815
    %2818 = vst.msk [vmem:[#allocation7 + $0x8] sm:$0xff] %vm62, %v2816
    // Predicated region
    $region18: #{tpu_custom_call.1} parent=1 // pred_check
      _
    $region19: #{tpu_custom_call.1} parent=1 // pred_check_branch
      %2820 = sbr.rel (0) target = $region21
    $region20: #{tpu_custom_call.1} parent=1 // pred_region
      %s2822 = ssub.s32 256, 256
      %2823 = vsyncadd [#allocation4], %s2822
      %s2824 = sshll.u32 [#allocation7], 4
      %s2825 = int_to_ptr.vmem [resolvable:$true] %s2824
      %2830 = dma.vmem_to_hbm [thread:$0]  %s2825, 256, %s2, [#allocation4], 128, 128, 8
    $region21: #{tpu_custom_call.1} parent=1 // pred_fallthru
      _
    // Predicated region
    $region22: #{tpu_custom_call.1} parent=1 // pred_check
      _
    $region23: #{tpu_custom_call.1} parent=1 // pred_check_branch
      %2832 = sbr.rel (0) target = $region25
    $region24: #{tpu_custom_call.1} parent=1 // pred_region
      %2833 = dma.done [#allocation4], 256
    $region25: #{tpu_custom_call.1} parent=1 // pred_fallthru
      _
    %2834 = vsyncpa [#allocation3], 1
    %2835 = vsyncpa [#allocation6], 1
    %2836 = vsyncpa [#allocation4], 1

</llo_original>
